<compile_context>
chip_gen: v7x
topology: tpu7x:2x2x1
jax: 0.10.0
libtpu: 0.0.40
codegen_flags: <defaults>
</compile_context>

<pallas_src>
import functools

import jax
import jax.numpy as jnp
from jax.experimental import pallas as pl
from jax.experimental.pallas import tpu as pltpu


# ---------------------------------------------------------------------------
# In-kernel helper: crossVTN-style LayerNormalization
#   mu    = mean(z, -1)
#   sigma = unbiased std (divisor n-1)
#   out   = (z - mu) / (sigma + eps) * gamma + beta
# One-pass mean/var so the two cross-lane (XLU) reductions are independent.
# ---------------------------------------------------------------------------
def _torch_layer_norm(z, gamma, beta, *, eps, n):
    inv_n = 1.0 / n
    mu = jnp.sum(z, axis=-1, keepdims=True) * inv_n
    ez2 = jnp.sum(z * z, axis=-1, keepdims=True) * inv_n
    var = (ez2 - mu * mu) * (n / (n - 1.0))     # unbiased, like torch.std
    sigma = jnp.sqrt(jnp.maximum(var, 0.0))
    return (z - mu) / (sigma + eps) * gamma + beta


# ---------------------------------------------------------------------------
# Fused CrossAttentionBlock kernel (TB batch elements per grid step)
# ---------------------------------------------------------------------------
def _cross_attn_block_kernel(
    x_ref, ctx_ref,                       # (TB, Lq, D), (TB, Lk, D)
    wq_ref, wk_ref, wv_ref,               # (D, H) each, H = n_head * d_head
    ln1_g_ref, ln1_b_ref,                 # (1, H)
    w1_ref, b1_ref,                       # (H, F), (1, F)
    w2_ref, b2_ref,                       # (F, H), (1, H)
    ln2_g_ref, ln2_b_ref,                 # (1, H)
    o_ref,                                # (TB, Lq, H)
    *, n_head, inv_temper, apply_ln, eps):
    tb, lq, d_in = x_ref.shape
    _, lk, _ = ctx_ref.shape
    hid = wq_ref.shape[1]
    dh = hid // n_head

    # ---- Fused QKV projections on (TB*L, D) row slabs (MXU-friendly M). ----
    x_in = x_ref[...].reshape(tb * lq, d_in)        # native dtype into the MXU
    ctx_in = ctx_ref[...].reshape(tb * lk, d_in)
    q = jnp.dot(x_in, wq_ref[...], preferred_element_type=jnp.float32)    # (TB*Lq, H)
    k = jnp.dot(ctx_in, wk_ref[...], preferred_element_type=jnp.float32)  # (TB*Lk, H)
    v = jnp.dot(ctx_in, wv_ref[...], preferred_element_type=jnp.float32)  # (TB*Lk, H)

    # ---- Head-batched attention: 2 batched matmuls + one softmax chain. ----
    q3 = q.reshape(tb, lq, hid)
    k3 = k.reshape(tb, lk, hid)
    v3 = v.reshape(tb, lk, hid)
    # (n_head*TB, L, dh) with batch index g = h*TB + b (one stack per tensor,
    # replacing the per-head slice/compute/concat loop).
    qh = jnp.concatenate([q3[:, :, h * dh:(h + 1) * dh] for h in range(n_head)], axis=0)
    kh = jnp.concatenate([k3[:, :, h * dh:(h + 1) * dh] for h in range(n_head)], axis=0)
    vh = jnp.concatenate([v3[:, :, h * dh:(h + 1) * dh] for h in range(n_head)], axis=0)

    s = jnp.einsum('gqd,gkd->gqk', qh, kh,
                   preferred_element_type=jnp.float32) * inv_temper        # (G, Lq, Lk)
    s = s - jnp.max(s, axis=-1, keepdims=True)
    p = jnp.exp(s)
    # EUP reciprocal keeps the divide off the VALU slots.
    p = p * pl.reciprocal(jnp.sum(p, axis=-1, keepdims=True), approx=True)
    oh = jnp.einsum('gqk,gkd->gqd', p.astype(vh.dtype), vh,
                    preferred_element_type=jnp.float32)                    # (G, Lq, dh)
    # Head-major concat == torch .view(h, b, t, e).permute(1, 2, 0, 3).reshape
    attn = jnp.concatenate([oh[h * tb:(h + 1) * tb] for h in range(n_head)],
                           axis=-1).reshape(tb * lq, hid)                  # (TB*Lq, H)

    # ---- Residual + LayerNorm (crossVTN variant, skipped when Lq == 1) ----
    x_res = x_in.astype(jnp.float32)
    y = attn + x_res
    if apply_ln:
        y = _torch_layer_norm(y, ln1_g_ref[...], ln1_b_ref[...], eps=eps, n=hid)

    # ---- Position-wise FFN (1x1 Conv1d pair == per-token linears) ----
    h1 = jnp.dot(y.astype(w1_ref.dtype), w1_ref[...],
                 preferred_element_type=jnp.float32) + b1_ref[...]
    h1 = jnp.maximum(h1, 0.0)
    z = jnp.dot(h1.astype(w2_ref.dtype), w2_ref[...],
                preferred_element_type=jnp.float32) + b2_ref[...]
    z = z + y
    if apply_ln:
        z = _torch_layer_norm(z, ln2_g_ref[...], ln2_b_ref[...], eps=eps, n=hid)

    o_ref[...] = z.reshape(tb, lq, hid).astype(o_ref.dtype)


def _pick_batch_tile(batch, lq, target_rows=256):
    """Largest divisor TB of `batch` such that (a) at least 2 grid steps remain
    (so v7x's two TensorCores both get work) and (b) TB*Lq <= target_rows
    (enough MXU rows without blowing up vreg/VMEM pressure)."""
    best = 1
    for tb in range(1, batch + 1):
        if batch % tb != 0:
            continue
        if batch >= 2 and batch // tb < 2:
            continue
        if tb * lq <= target_rows:
            best = tb
    return best


def cross_attention_block(x, context, params, *, n_heads, layer_norm=True,
                          eps=1e-3, batch_tile=None):
    """x: (B, Lq, D), context: (B, Lk, D) -> (B, Lq, hidden)."""
    B, Lq, D = x.shape
    Bc, Lk, Dc = context.shape
    assert B == Bc and D == Dc
    hid = params["wq"].shape[1]
    f_inner = params["ff_w1"].shape[1]
    assert hid % n_heads == 0
    assert D == hid, "residual add requires input_size == hidden_size"

    tb = batch_tile if batch_tile is not None else _pick_batch_tile(B, Lq)
    assert B % tb == 0
    # crossVTN LayerNormalization is a no-op when the sequence length is 1.
    apply_ln = bool(layer_norm) and (Lq > 1)
    inv_temper = 1.0 / (float(D) ** 0.5)   # temper = sqrt(input_size)

    kernel = functools.partial(
        _cross_attn_block_kernel,
        n_head=n_heads, inv_temper=inv_temper, apply_ln=apply_ln, eps=eps)

    def resident(shape):
        # Weights: same block every grid step -> VMEM-resident, never re-fetched.
        # TODO(synk): at production dims (D=H~1024, F~4096) add
        # pipeline_mode=pl.Buffered(1) so the resident weights are single-
        # buffered and the fused design still fits v7x's 64 MiB VMEM.
        return pl.BlockSpec(shape, lambda b: (0, 0))

    out = pl.pallas_call(
        kernel,
        out_shape=jax.ShapeDtypeStruct((B, Lq, hid), x.dtype),
        grid=(B // tb,),
        in_specs=[
            pl.BlockSpec((tb, Lq, D), lambda b: (b, 0, 0)),   # x (query / residual)
            pl.BlockSpec((tb, Lk, D), lambda b: (b, 0, 0)),   # context (key/value)
            resident((D, hid)),        # wq  (all heads fused, head-major cols)
            resident((D, hid)),        # wk
            resident((D, hid)),        # wv
            resident((1, hid)),        # ln1 gamma
            resident((1, hid)),        # ln1 beta
            resident((hid, f_inner)),  # ffn w1
            resident((1, f_inner)),    # ffn b1
            resident((f_inner, hid)),  # ffn w2
            resident((1, hid)),        # ffn b2
            resident((1, hid)),        # ln2 gamma
            resident((1, hid)),        # ln2 beta
        ],
        out_specs=pl.BlockSpec((tb, Lq, hid), lambda b: (b, 0, 0)),
        compiler_params=pltpu.CompilerParams(
            dimension_semantics=("parallel",),
            vmem_limit_bytes=64 * 1024 * 1024),
    )(x, context,
      params["wq"], params["wk"], params["wv"],
      params["ln1_g"], params["ln1_b"],
      params["ff_w1"], params["ff_b1"], params["ff_w2"], params["ff_b2"],
      params["ln2_g"], params["ln2_b"])
    return out


# ---------------------------------------------------------------------------
# One-time parameter conversion from PyTorch layouts to kernel layouts
# ---------------------------------------------------------------------------
def convert_torch_params(tp):
    n_head, D, d_k = tp["w_qs"].shape

    def flat(w):  # (n_head, D, d) -> (D, n_head*d), head-major on the last axis
        return jnp.transpose(w, (1, 0, 2)).reshape(D, -1)

    return {
        "wq": flat(tp["w_qs"]), "wk": flat(tp["w_ks"]), "wv": flat(tp["w_vs"]),
        "ln1_g": tp["ln1_a"].reshape(1, -1), "ln1_b": tp["ln1_b"].reshape(1, -1),
        "ff_w1": jnp.transpose(tp["conv1_w"][:, :, 0]),   # (hid, F)
        "ff_b1": tp["conv1_b"].reshape(1, -1),
        "ff_w2": jnp.transpose(tp["conv2_w"][:, :, 0]),   # (F, hid)
        "ff_b2": tp["conv2_b"].reshape(1, -1),
        "ln2_g": tp["ln2_a"].reshape(1, -1), "ln2_b": tp["ln2_b"].reshape(1, -1),
    }


# ---------------------------------------------------------------------------
# Pure-JAX reference mirroring the PyTorch module (eval mode)
# ---------------------------------------------------------------------------
def reference_forward(x, ctx, tp, *, n_heads, layer_norm=True, eps=1e-3):
    B, Lq, D = x.shape
    P = jax.lax.Precision.HIGHEST
    q_p = jnp.einsum('bqd,hde->hbqe', x, tp["w_qs"], precision=P)
    k_p = jnp.einsum('bkd,hde->hbke', ctx, tp["w_ks"], precision=P)
    v_p = jnp.einsum('bkd,hde->hbke', ctx, tp["w_vs"], precision=P)
    scores = jnp.einsum('hbqe,hbke->hbqk', q_p, k_p, precision=P) / (float(D) ** 0.5)
    attn = jax.nn.softmax(scores, axis=-1)
    out = jnp.einsum('hbqk,hbke->hbqe', attn, v_p, precision=P)     # (nh,B,Lq,dv)
    out = jnp.transpose(out, (1, 2, 0, 3)).reshape(B, Lq, -1)       # (B,Lq,nh*dv)

    def ln(z, g, b):
        if (not layer_norm) or z.shape[1] == 1:
            return z
        mu = jnp.mean(z, axis=-1, keepdims=True)
        sigma = jnp.std(z, axis=-1, keepdims=True, ddof=1)          # unbiased, like torch.std
        return (z - mu) / (sigma + eps) * g + b

    y = ln(out + x, tp["ln1_a"], tp["ln1_b"])
    h1 = jax.nn.relu(
        jnp.einsum('blh,fh->blf', y, tp["conv1_w"][:, :, 0], precision=P) + tp["conv1_b"])
    z = jnp.einsum('blf,hf->blh', h1, tp["conv2_w"][:, :, 0], precision=P) + tp["conv2_b"]
    return ln(z + y, tp["ln2_a"], tp["ln2_b"])


if __name__ == "__main__":
    # Small shapes consistent with the module: residual requires input == hidden.
    B, Lq, Lk = 2, 8, 16
    input_size = hidden_size = 32
    inner_hidden_size = 64
    n_heads = 4
    d_head = hidden_size // n_heads

    keys = jax.random.split(jax.random.PRNGKey(0), 13)
    x = jax.random.normal(keys[0], (B, Lq, input_size), jnp.float32)
    context = jax.random.normal(keys[1], (B, Lk, input_size), jnp.float32)

    qkv_scale = (2.0 / (input_size + d_head)) ** 0.5   # xavier_normal-like
    torch_params = {
        "w_qs": qkv_scale * jax.random.normal(keys[2], (n_heads, input_size, d_head), jnp.float32),
        "w_ks": qkv_scale * jax.random.normal(keys[3], (n_heads, input_size, d_head), jnp.float32),
        "w_vs": qkv_scale * jax.random.normal(keys[4], (n_heads, input_size, d_head), jnp.float32),
        "ln1_a": 1.0 + 0.1 * jax.random.normal(keys[5], (hidden_size,), jnp.float32),
        "ln1_b": 0.1 * jax.random.normal(keys[6], (hidden_size,), jnp.float32),
        "conv1_w": 0.1 * jax.random.normal(keys[7], (inner_hidden_size, hidden_size, 1), jnp.float32),
        "conv1_b": 0.1 * jax.random.normal(keys[8], (inner_hidden_size,), jnp.float32),
        "conv2_w": 0.1 * jax.random.normal(keys[9], (hidden_size, inner_hidden_size, 1), jnp.float32),
        "conv2_b": 0.1 * jax.random.normal(keys[10], (hidden_size,), jnp.float32),
        "ln2_a": 1.0 + 0.1 * jax.random.normal(keys[11], (hidden_size,), jnp.float32),
        "ln2_b": 0.1 * jax.random.normal(keys[12], (hidden_size,), jnp.float32),
    }
    kernel_params = convert_torch_params(torch_params)

    out = cross_attention_block(x, context, kernel_params, n_heads=n_heads)
    out = jax.block_until_ready(out)
    assert out.shape == (B, Lq, hidden_size), out.shape

    ref = reference_forward(x, context, torch_params, n_heads=n_heads)
    max_err = float(jnp.max(jnp.abs(out - ref)))
    # Tolerance allows for the EUP approximate reciprocal in the softmax denom.
    assert jnp.allclose(out, ref, rtol=2e-3, atol=2e-3), f"max_err={max_err}"

    print("KERNEL_OK")
</pallas_src>

<mosaic_0001>
module attributes {stable_mosaic.version = 11 : i64} {
  func.func @_cross_attn_block_kernel(%arg0: i32, %arg1: memref<1x8x32xf32, #tpu.memory_space<vmem>>, %arg2: memref<1x16x32xf32, #tpu.memory_space<vmem>>, %arg3: memref<32x32xf32, #tpu.memory_space<vmem>>, %arg4: memref<32x32xf32, #tpu.memory_space<vmem>>, %arg5: memref<32x32xf32, #tpu.memory_space<vmem>>, %arg6: memref<1x32xf32, #tpu.memory_space<vmem>>, %arg7: memref<1x32xf32, #tpu.memory_space<vmem>>, %arg8: memref<32x64xf32, #tpu.memory_space<vmem>>, %arg9: memref<1x64xf32, #tpu.memory_space<vmem>>, %arg10: memref<64x32xf32, #tpu.memory_space<vmem>>, %arg11: memref<1x32xf32, #tpu.memory_space<vmem>>, %arg12: memref<1x32xf32, #tpu.memory_space<vmem>>, %arg13: memref<1x32xf32, #tpu.memory_space<vmem>>, %arg14: memref<1x8x32xf32, #tpu.memory_space<vmem>>) attributes {dimension_semantics = [#tpu.dimension_semantics<parallel>], iteration_bounds = array<i64: 2>, scalar_prefetch = 0 : i64, scratch_operands = 0 : i64, tpu.core_type = #tpu.core_type<tc>, window_params = [{transform_indices = @transform_0, window_bounds = array<i64: 1, 8, 32>}, {transform_indices = @transform_1, window_bounds = array<i64: 1, 16, 32>}, {pipeline_mode = #tpu.pipeline_mode<synchronous>, transform_indices = @transform_2, window_bounds = array<i64: 32, 32>}, {pipeline_mode = #tpu.pipeline_mode<synchronous>, transform_indices = @transform_3, window_bounds = array<i64: 32, 32>}, {pipeline_mode = #tpu.pipeline_mode<synchronous>, transform_indices = @transform_4, window_bounds = array<i64: 32, 32>}, {pipeline_mode = #tpu.pipeline_mode<synchronous>, transform_indices = @transform_5, window_bounds = array<i64: 1, 32>}, {pipeline_mode = #tpu.pipeline_mode<synchronous>, transform_indices = @transform_6, window_bounds = array<i64: 1, 32>}, {pipeline_mode = #tpu.pipeline_mode<synchronous>, transform_indices = @transform_7, window_bounds = array<i64: 32, 64>}, {pipeline_mode = #tpu.pipeline_mode<synchronous>, transform_indices = @transform_8, window_bounds = array<i64: 1, 64>}, {pipeline_mode = #tpu.pipeline_mode<synchronous>, transform_indices = @transform_9, window_bounds = array<i64: 64, 32>}, {pipeline_mode = #tpu.pipeline_mode<synchronous>, transform_indices = @transform_10, window_bounds = array<i64: 1, 32>}, {pipeline_mode = #tpu.pipeline_mode<synchronous>, transform_indices = @transform_11, window_bounds = array<i64: 1, 32>}, {pipeline_mode = #tpu.pipeline_mode<synchronous>, transform_indices = @transform_12, window_bounds = array<i64: 1, 32>}, {transform_indices = @transform_13, window_bounds = array<i64: 1, 8, 32>}]} {
    %c0 = arith.constant 0 : index
    %c0_0 = arith.constant 0 : index
    %c0_1 = arith.constant 0 : index
    %0 = vector.load %arg1[%c0, %c0_0, %c0_1] : memref<1x8x32xf32, #tpu.memory_space<vmem>>, vector<1x8x32xf32>
    %1 = vector.shape_cast %0 : vector<1x8x32xf32> to vector<8x32xf32>
    %c0_2 = arith.constant 0 : index
    %c0_3 = arith.constant 0 : index
    %c0_4 = arith.constant 0 : index
    %2 = vector.load %arg2[%c0_2, %c0_3, %c0_4] : memref<1x16x32xf32, #tpu.memory_space<vmem>>, vector<1x16x32xf32>
    %3 = vector.shape_cast %2 : vector<1x16x32xf32> to vector<16x32xf32>
    %c0_5 = arith.constant 0 : index
    %c0_6 = arith.constant 0 : index
    %4 = vector.load %arg3[%c0_5, %c0_6] : memref<32x32xf32, #tpu.memory_space<vmem>>, vector<32x32xf32>
    %cst = arith.constant dense<0.000000e+00> : vector<8x32xf32>
    %5 = tpu.matmul %1, %4, %cst {dimension_numbers = #tpu.dot_dimension_numbers<[1], [0], [0], [1], [0, 0, 1, 1], [], []>} : vector<8x32xf32>, vector<32x32xf32>, vector<8x32xf32> -> vector<8x32xf32>
    %c0_7 = arith.constant 0 : index
    %c0_8 = arith.constant 0 : index
    %6 = vector.load %arg4[%c0_7, %c0_8] : memref<32x32xf32, #tpu.memory_space<vmem>>, vector<32x32xf32>
    %cst_9 = arith.constant dense<0.000000e+00> : vector<16x32xf32>
    %7 = tpu.matmul %3, %6, %cst_9 {dimension_numbers = #tpu.dot_dimension_numbers<[1], [0], [0], [1], [0, 0, 1, 1], [], []>} : vector<16x32xf32>, vector<32x32xf32>, vector<16x32xf32> -> vector<16x32xf32>
    %c0_10 = arith.constant 0 : index
    %c0_11 = arith.constant 0 : index
    %8 = vector.load %arg5[%c0_10, %c0_11] : memref<32x32xf32, #tpu.memory_space<vmem>>, vector<32x32xf32>
    %cst_12 = arith.constant dense<0.000000e+00> : vector<16x32xf32>
    %9 = tpu.matmul %3, %8, %cst_12 {dimension_numbers = #tpu.dot_dimension_numbers<[1], [0], [0], [1], [0, 0, 1, 1], [], []>} : vector<16x32xf32>, vector<32x32xf32>, vector<16x32xf32> -> vector<16x32xf32>
    %10 = vector.shape_cast %5 : vector<8x32xf32> to vector<1x8x32xf32>
    %11 = vector.shape_cast %7 : vector<16x32xf32> to vector<1x16x32xf32>
    %12 = vector.shape_cast %9 : vector<16x32xf32> to vector<1x16x32xf32>
    %13 = vector.extract_strided_slice %10 {offsets = [0, 0, 0], sizes = [1, 8, 8], strides = [1, 1, 1]} : vector<1x8x32xf32> to vector<1x8x8xf32>
    %14 = vector.extract_strided_slice %10 {offsets = [0, 0, 8], sizes = [1, 8, 8], strides = [1, 1, 1]} : vector<1x8x32xf32> to vector<1x8x8xf32>
    %15 = vector.extract_strided_slice %10 {offsets = [0, 0, 16], sizes = [1, 8, 8], strides = [1, 1, 1]} : vector<1x8x32xf32> to vector<1x8x8xf32>
    %16 = vector.extract_strided_slice %10 {offsets = [0, 0, 24], sizes = [1, 8, 8], strides = [1, 1, 1]} : vector<1x8x32xf32> to vector<1x8x8xf32>
    %17 = tpu.concatenate %13, %14, %15, %16 in 0 : vector<1x8x8xf32>, vector<1x8x8xf32>, vector<1x8x8xf32>, vector<1x8x8xf32> -> vector<4x8x8xf32>
    %18 = vector.extract_strided_slice %11 {offsets = [0, 0, 0], sizes = [1, 16, 8], strides = [1, 1, 1]} : vector<1x16x32xf32> to vector<1x16x8xf32>
    %19 = vector.extract_strided_slice %11 {offsets = [0, 0, 8], sizes = [1, 16, 8], strides = [1, 1, 1]} : vector<1x16x32xf32> to vector<1x16x8xf32>
    %20 = vector.extract_strided_slice %11 {offsets = [0, 0, 16], sizes = [1, 16, 8], strides = [1, 1, 1]} : vector<1x16x32xf32> to vector<1x16x8xf32>
    %21 = vector.extract_strided_slice %11 {offsets = [0, 0, 24], sizes = [1, 16, 8], strides = [1, 1, 1]} : vector<1x16x32xf32> to vector<1x16x8xf32>
    %22 = tpu.concatenate %18, %19, %20, %21 in 0 : vector<1x16x8xf32>, vector<1x16x8xf32>, vector<1x16x8xf32>, vector<1x16x8xf32> -> vector<4x16x8xf32>
    %23 = vector.extract_strided_slice %12 {offsets = [0, 0, 0], sizes = [1, 16, 8], strides = [1, 1, 1]} : vector<1x16x32xf32> to vector<1x16x8xf32>
    %24 = vector.extract_strided_slice %12 {offsets = [0, 0, 8], sizes = [1, 16, 8], strides = [1, 1, 1]} : vector<1x16x32xf32> to vector<1x16x8xf32>
    %25 = vector.extract_strided_slice %12 {offsets = [0, 0, 16], sizes = [1, 16, 8], strides = [1, 1, 1]} : vector<1x16x32xf32> to vector<1x16x8xf32>
    %26 = vector.extract_strided_slice %12 {offsets = [0, 0, 24], sizes = [1, 16, 8], strides = [1, 1, 1]} : vector<1x16x32xf32> to vector<1x16x8xf32>
    %27 = tpu.concatenate %23, %24, %25, %26 in 0 : vector<1x16x8xf32>, vector<1x16x8xf32>, vector<1x16x8xf32>, vector<1x16x8xf32> -> vector<4x16x8xf32>
    "tpu.trace_start"() <{level = 10 : i32, message = "gqd,gkd->gqk"}> : () -> ()
    %cst_13 = arith.constant dense<0.000000e+00> : vector<4x8x16xf32>
    %28 = tpu.matmul %17, %22, %cst_13 {dimension_numbers = #tpu.dot_dimension_numbers<[2], [2], [1], [1], [0, 0, 0, 1, 1, 1], [0], [0]>} : vector<4x8x8xf32>, vector<4x16x8xf32>, vector<4x8x16xf32> -> vector<4x8x16xf32>
    "tpu.trace_stop"() : () -> ()
    %cst_14 = arith.constant 0.176776692 : f32
    %29 = vector.broadcast %cst_14 : f32 to vector<4x8x16xf32>
    %30 = arith.mulf %28, %29 : vector<4x8x16xf32>
    %cst_15 = arith.constant dense<0xFF800000> : vector<4x8xf32>
    %31 = vector.multi_reduction <maximumf>, %30, %cst_15 [2] : vector<4x8x16xf32> to vector<4x8xf32>
    %32 = vector.shape_cast %31 : vector<4x8xf32> to vector<4x8x1xf32>
    %33 = vector.broadcast %32 : vector<4x8x1xf32> to vector<4x8x16xf32>
    %34 = arith.subf %30, %33 : vector<4x8x16xf32>
    %35 = math.exp %34 : vector<4x8x16xf32>
    %cst_16 = arith.constant dense<0.000000e+00> : vector<4x8xf32>
    %36 = vector.multi_reduction <add>, %35, %cst_16 [2] : vector<4x8x16xf32> to vector<4x8xf32>
    %37 = vector.shape_cast %36 : vector<4x8xf32> to vector<4x8x1xf32>
    %38 = tpu.reciprocal %37 {approx = true} : vector<4x8x1xf32> -> vector<4x8x1xf32>
    %39 = vector.broadcast %38 : vector<4x8x1xf32> to vector<4x8x16xf32>
    %40 = arith.mulf %35, %39 : vector<4x8x16xf32>
    "tpu.trace_start"() <{level = 10 : i32, message = "gqk,gkd->gqd"}> : () -> ()
    %cst_17 = arith.constant dense<0.000000e+00> : vector<4x8x8xf32>
    %41 = tpu.matmul %40, %27, %cst_17 {dimension_numbers = #tpu.dot_dimension_numbers<[2], [1], [1], [2], [0, 0, 0, 1, 1, 2], [0], [0]>} : vector<4x8x16xf32>, vector<4x16x8xf32>, vector<4x8x8xf32> -> vector<4x8x8xf32>
    "tpu.trace_stop"() : () -> ()
    %42 = vector.extract_strided_slice %41 {offsets = [0, 0, 0], sizes = [1, 8, 8], strides = [1, 1, 1]} : vector<4x8x8xf32> to vector<1x8x8xf32>
    %43 = vector.extract_strided_slice %41 {offsets = [1, 0, 0], sizes = [1, 8, 8], strides = [1, 1, 1]} : vector<4x8x8xf32> to vector<1x8x8xf32>
    %44 = vector.extract_strided_slice %41 {offsets = [2, 0, 0], sizes = [1, 8, 8], strides = [1, 1, 1]} : vector<4x8x8xf32> to vector<1x8x8xf32>
    %45 = vector.extract_strided_slice %41 {offsets = [3, 0, 0], sizes = [1, 8, 8], strides = [1, 1, 1]} : vector<4x8x8xf32> to vector<1x8x8xf32>
    %46 = tpu.concatenate %42, %43, %44, %45 in 2 : vector<1x8x8xf32>, vector<1x8x8xf32>, vector<1x8x8xf32>, vector<1x8x8xf32> -> vector<1x8x32xf32>
    %47 = vector.shape_cast %46 : vector<1x8x32xf32> to vector<8x32xf32>
    %48 = arith.addf %47, %1 : vector<8x32xf32>
    %c0_18 = arith.constant 0 : index
    %c0_19 = arith.constant 0 : index
    %49 = vector.load %arg6[%c0_18, %c0_19] : memref<1x32xf32, #tpu.memory_space<vmem>>, vector<1x32xf32>
    %c0_20 = arith.constant 0 : index
    %c0_21 = arith.constant 0 : index
    %50 = vector.load %arg7[%c0_20, %c0_21] : memref<1x32xf32, #tpu.memory_space<vmem>>, vector<1x32xf32>
    %cst_22 = arith.constant dense<0.000000e+00> : vector<8xf32>
    %51 = vector.multi_reduction <add>, %48, %cst_22 [1] : vector<8x32xf32> to vector<8xf32>
    %52 = vector.shape_cast %51 : vector<8xf32> to vector<8x1xf32>
    %cst_23 = arith.constant 3.125000e-02 : f32
    %53 = vector.broadcast %cst_23 : f32 to vector<8x1xf32>
    %54 = arith.mulf %52, %53 : vector<8x1xf32>
    %55 = arith.mulf %48, %48 : vector<8x32xf32>
    %cst_24 = arith.constant dense<0.000000e+00> : vector<8xf32>
    %56 = vector.multi_reduction <add>, %55, %cst_24 [1] : vector<8x32xf32> to vector<8xf32>
    %57 = vector.shape_cast %56 : vector<8xf32> to vector<8x1xf32>
    %cst_25 = arith.constant 3.125000e-02 : f32
    %58 = vector.broadcast %cst_25 : f32 to vector<8x1xf32>
    %59 = arith.mulf %57, %58 : vector<8x1xf32>
    %60 = arith.mulf %54, %54 : vector<8x1xf32>
    %61 = arith.subf %59, %60 : vector<8x1xf32>
    %cst_26 = arith.constant 1.03225803 : f32
    %62 = vector.broadcast %cst_26 : f32 to vector<8x1xf32>
    %63 = arith.mulf %61, %62 : vector<8x1xf32>
    %cst_27 = arith.constant 0.000000e+00 : f32
    %64 = vector.broadcast %cst_27 : f32 to vector<8x1xf32>
    %65 = arith.maximumf %63, %64 : vector<8x1xf32>
    %66 = math.sqrt %65 : vector<8x1xf32>
    %67 = vector.broadcast %54 : vector<8x1xf32> to vector<8x32xf32>
    %68 = arith.subf %48, %67 : vector<8x32xf32>
    %cst_28 = arith.constant 1.000000e-03 : f32
    %69 = vector.broadcast %cst_28 : f32 to vector<8x1xf32>
    %70 = arith.addf %66, %69 : vector<8x1xf32>
    %71 = vector.broadcast %70 : vector<8x1xf32> to vector<8x32xf32>
    %72 = arith.divf %68, %71 : vector<8x32xf32>
    %73 = vector.broadcast %49 : vector<1x32xf32> to vector<8x32xf32>
    %74 = arith.mulf %72, %73 : vector<8x32xf32>
    %75 = vector.broadcast %50 : vector<1x32xf32> to vector<8x32xf32>
    %76 = arith.addf %74, %75 : vector<8x32xf32>
    %c0_29 = arith.constant 0 : index
    %c0_30 = arith.constant 0 : index
    %77 = vector.load %arg8[%c0_29, %c0_30] : memref<32x64xf32, #tpu.memory_space<vmem>>, vector<32x64xf32>
    %cst_31 = arith.constant dense<0.000000e+00> : vector<8x64xf32>
    %78 = tpu.matmul %76, %77, %cst_31 {dimension_numbers = #tpu.dot_dimension_numbers<[1], [0], [0], [1], [0, 0, 1, 1], [], []>} : vector<8x32xf32>, vector<32x64xf32>, vector<8x64xf32> -> vector<8x64xf32>
    %c0_32 = arith.constant 0 : index
    %c0_33 = arith.constant 0 : index
    %79 = vector.load %arg9[%c0_32, %c0_33] : memref<1x64xf32, #tpu.memory_space<vmem>>, vector<1x64xf32>
    %80 = vector.broadcast %79 : vector<1x64xf32> to vector<8x64xf32>
    %81 = arith.addf %78, %80 : vector<8x64xf32>
    %cst_34 = arith.constant 0.000000e+00 : f32
    %82 = vector.broadcast %cst_34 : f32 to vector<8x64xf32>
    %83 = arith.maximumf %81, %82 : vector<8x64xf32>
    %c0_35 = arith.constant 0 : index
    %c0_36 = arith.constant 0 : index
    %84 = vector.load %arg10[%c0_35, %c0_36] : memref<64x32xf32, #tpu.memory_space<vmem>>, vector<64x32xf32>
    %cst_37 = arith.constant dense<0.000000e+00> : vector<8x32xf32>
    %85 = tpu.matmul %83, %84, %cst_37 {dimension_numbers = #tpu.dot_dimension_numbers<[1], [0], [0], [1], [0, 0, 1, 1], [], []>} : vector<8x64xf32>, vector<64x32xf32>, vector<8x32xf32> -> vector<8x32xf32>
    %c0_38 = arith.constant 0 : index
    %c0_39 = arith.constant 0 : index
    %86 = vector.load %arg11[%c0_38, %c0_39] : memref<1x32xf32, #tpu.memory_space<vmem>>, vector<1x32xf32>
    %87 = vector.broadcast %86 : vector<1x32xf32> to vector<8x32xf32>
    %88 = arith.addf %85, %87 : vector<8x32xf32>
    %89 = arith.addf %88, %76 : vector<8x32xf32>
    %c0_40 = arith.constant 0 : index
    %c0_41 = arith.constant 0 : index
    %90 = vector.load %arg12[%c0_40, %c0_41] : memref<1x32xf32, #tpu.memory_space<vmem>>, vector<1x32xf32>
    %c0_42 = arith.constant 0 : index
    %c0_43 = arith.constant 0 : index
    %91 = vector.load %arg13[%c0_42, %c0_43] : memref<1x32xf32, #tpu.memory_space<vmem>>, vector<1x32xf32>
    %cst_44 = arith.constant dense<0.000000e+00> : vector<8xf32>
    %92 = vector.multi_reduction <add>, %89, %cst_44 [1] : vector<8x32xf32> to vector<8xf32>
    %93 = vector.shape_cast %92 : vector<8xf32> to vector<8x1xf32>
    %cst_45 = arith.constant 3.125000e-02 : f32
    %94 = vector.broadcast %cst_45 : f32 to vector<8x1xf32>
    %95 = arith.mulf %93, %94 : vector<8x1xf32>
    %96 = arith.mulf %89, %89 : vector<8x32xf32>
    %cst_46 = arith.constant dense<0.000000e+00> : vector<8xf32>
    %97 = vector.multi_reduction <add>, %96, %cst_46 [1] : vector<8x32xf32> to vector<8xf32>
    %98 = vector.shape_cast %97 : vector<8xf32> to vector<8x1xf32>
    %cst_47 = arith.constant 3.125000e-02 : f32
    %99 = vector.broadcast %cst_47 : f32 to vector<8x1xf32>
    %100 = arith.mulf %98, %99 : vector<8x1xf32>
    %101 = arith.mulf %95, %95 : vector<8x1xf32>
    %102 = arith.subf %100, %101 : vector<8x1xf32>
    %cst_48 = arith.constant 1.03225803 : f32
    %103 = vector.broadcast %cst_48 : f32 to vector<8x1xf32>
    %104 = arith.mulf %102, %103 : vector<8x1xf32>
    %cst_49 = arith.constant 0.000000e+00 : f32
    %105 = vector.broadcast %cst_49 : f32 to vector<8x1xf32>
    %106 = arith.maximumf %104, %105 : vector<8x1xf32>
    %107 = math.sqrt %106 : vector<8x1xf32>
    %108 = vector.broadcast %95 : vector<8x1xf32> to vector<8x32xf32>
    %109 = arith.subf %89, %108 : vector<8x32xf32>
    %cst_50 = arith.constant 1.000000e-03 : f32
    %110 = vector.broadcast %cst_50 : f32 to vector<8x1xf32>
    %111 = arith.addf %107, %110 : vector<8x1xf32>
    %112 = vector.broadcast %111 : vector<8x1xf32> to vector<8x32xf32>
    %113 = arith.divf %109, %112 : vector<8x32xf32>
    %114 = vector.broadcast %90 : vector<1x32xf32> to vector<8x32xf32>
    %115 = arith.mulf %113, %114 : vector<8x32xf32>
    %116 = vector.broadcast %91 : vector<1x32xf32> to vector<8x32xf32>
    %117 = arith.addf %115, %116 : vector<8x32xf32>
    %118 = vector.shape_cast %117 : vector<8x32xf32> to vector<1x8x32xf32>
    %c0_51 = arith.constant 0 : index
    %c0_52 = arith.constant 0 : index
    %c0_53 = arith.constant 0 : index
    %119 = vector.load %arg14[%c0_51, %c0_52, %c0_53] : memref<1x8x32xf32, #tpu.memory_space<vmem>>, vector<1x8x32xf32>
    tpu.vector_store %arg14[%c0_51, %c0_52, %c0_53], %118 {strides = array<i32>} : memref<1x8x32xf32, #tpu.memory_space<vmem>>, vector<1x8x32xf32>,
    return
  }
  func.func @transform_0(%arg0: i32) -> (i32, i32, i32) {
    %c0_i32 = arith.constant 0 : i32
    %c0_i32_0 = arith.constant 0 : i32
    %c0_i32_1 = arith.constant 0 : i32
    return %arg0, %c0_i32, %c0_i32_0 : i32, i32, i32
  }
  func.func @transform_1(%arg0: i32) -> (i32, i32, i32) {
    %c0_i32 = arith.constant 0 : i32
    %c0_i32_0 = arith.constant 0 : i32
    %c0_i32_1 = arith.constant 0 : i32
    return %arg0, %c0_i32, %c0_i32_0 : i32, i32, i32
  }
  func.func @transform_2(%arg0: i32) -> (i32, i32) {
    %c0_i32 = arith.constant 0 : i32
    %c0_i32_0 = arith.constant 0 : i32
    %c0_i32_1 = arith.constant 0 : i32
    return %c0_i32, %c0_i32_0 : i32, i32
  }
  func.func @transform_3(%arg0: i32) -> (i32, i32) {
    %c0_i32 = arith.constant 0 : i32
    %c0_i32_0 = arith.constant 0 : i32
    %c0_i32_1 = arith.constant 0 : i32
    return %c0_i32, %c0_i32_0 : i32, i32
  }
  func.func @transform_4(%arg0: i32) -> (i32, i32) {
    %c0_i32 = arith.constant 0 : i32
    %c0_i32_0 = arith.constant 0 : i32
    %c0_i32_1 = arith.constant 0 : i32
    return %c0_i32, %c0_i32_0 : i32, i32
  }
  func.func @transform_5(%arg0: i32) -> (i32, i32) {
    %c0_i32 = arith.constant 0 : i32
    %c0_i32_0 = arith.constant 0 : i32
    %c0_i32_1 = arith.constant 0 : i32
    return %c0_i32, %c0_i32_0 : i32, i32
  }
  func.func @transform_6(%arg0: i32) -> (i32, i32) {
    %c0_i32 = arith.constant 0 : i32
    %c0_i32_0 = arith.constant 0 : i32
    %c0_i32_1 = arith.constant 0 : i32
    return %c0_i32, %c0_i32_0 : i32, i32
  }
  func.func @transform_7(%arg0: i32) -> (i32, i32) {
    %c0_i32 = arith.constant 0 : i32
    %c0_i32_0 = arith.constant 0 : i32
    %c0_i32_1 = arith.constant 0 : i32
    return %c0_i32, %c0_i32_0 : i32, i32
  }
  func.func @transform_8(%arg0: i32) -> (i32, i32) {
    %c0_i32 = arith.constant 0 : i32
    %c0_i32_0 = arith.constant 0 : i32
    %c0_i32_1 = arith.constant 0 : i32
    return %c0_i32, %c0_i32_0 : i32, i32
  }
  func.func @transform_9(%arg0: i32) -> (i32, i32) {
    %c0_i32 = arith.constant 0 : i32
    %c0_i32_0 = arith.constant 0 : i32
    %c0_i32_1 = arith.constant 0 : i32
    return %c0_i32, %c0_i32_0 : i32, i32
  }
  func.func @transform_10(%arg0: i32) -> (i32, i32) {
    %c0_i32 = arith.constant 0 : i32
    %c0_i32_0 = arith.constant 0 : i32
    %c0_i32_1 = arith.constant 0 : i32
    return %c0_i32, %c0_i32_0 : i32, i32
  }
  func.func @transform_11(%arg0: i32) -> (i32, i32) {
    %c0_i32 = arith.constant 0 : i32
    %c0_i32_0 = arith.constant 0 : i32
    %c0_i32_1 = arith.constant 0 : i32
    return %c0_i32, %c0_i32_0 : i32, i32
  }
  func.func @transform_12(%arg0: i32) -> (i32, i32) {
    %c0_i32 = arith.constant 0 : i32
    %c0_i32_0 = arith.constant 0 : i32
    %c0_i32_1 = arith.constant 0 : i32
    return %c0_i32, %c0_i32_0 : i32, i32
  }
  func.func @transform_13(%arg0: i32) -> (i32, i32, i32) {
    %c0_i32 = arith.constant 0 : i32
    %c0_i32_0 = arith.constant 0 : i32
    %c0_i32_1 = arith.constant 0 : i32
    return %arg0, %c0_i32, %c0_i32_0 : i32, i32, i32
  }
}

</mosaic_0001>

<llo_original>
// kernel: tpu_custom_call.1
$region0: #{tpu_custom_call.1}
  #allocation0 [shape = 'u32[]', space=smem, size = 0x4, offset = 0x4, fixed_abs, tag = 'smem constant byte address 0x4 - core index']
  #allocation1 [shape = 'u32[144,128]{1,0:T(1,128)}', space=vmem, size = 0x12000, scoped, tag = 'internal scratch']
  %s0 = inlined_call_operand.hbm [shape: f32[2,8,32], index: 0, kind: input, shape index: {}]
  %s1 = inlined_call_operand.hbm [shape: f32[2,16,32], index: 1, kind: input, shape index: {}]
  %s2 = inlined_call_operand.hbm [shape: f32[32,32], index: 2, kind: input, shape index: {}]
  %s3 = inlined_call_operand.hbm [shape: f32[32,32], index: 3, kind: input, shape index: {}]
  %s4 = inlined_call_operand.hbm [shape: f32[32,32], index: 4, kind: input, shape index: {}]
  %s5 = inlined_call_operand.hbm [shape: f32[1,32], index: 5, kind: input, shape index: {}]
  %s6 = inlined_call_operand.hbm [shape: f32[1,32], index: 6, kind: input, shape index: {}]
  %s7 = inlined_call_operand.hbm [shape: f32[32,64], index: 7, kind: input, shape index: {}]
  %s8 = inlined_call_operand.hbm [shape: f32[1,64], index: 8, kind: input, shape index: {}]
  %s9 = inlined_call_operand.hbm [shape: f32[64,32], index: 9, kind: input, shape index: {}]
  %s10 = inlined_call_operand.hbm [shape: f32[1,32], index: 10, kind: input, shape index: {}]
  %s11 = inlined_call_operand.hbm [shape: f32[1,32], index: 11, kind: input, shape index: {}]
  %s12 = inlined_call_operand.hbm [shape: f32[1,32], index: 12, kind: input, shape index: {}]
  %s13 = inlined_call_operand.hbm [shape: f32[2,8,32], index: 13, kind: output, shape index: {}]
  %s14 = sld [smem:[#allocation0]]
  $region137: #{tpu_custom_call.1} parent=0
    _
  %s16 = ssub.s32 1, %s14
  %s17 = scalar_select 0, %s16, %s14
  $region1: #{tpu_custom_call.1} parent=0
    #allocation2 [shape = 'u8[8192]{0}', space=vmem, size = 0x2000, scoped, tag = 'input window, operand 0']
    #allocation3 [shape = 's32[2]{0}', space=sflag, size = 0x8, scoped, tag = 'scoped memory for tpu_custom_call.1']
    #allocation4 [shape = 's32[2]{0}', space=sflag, size = 0x8, scoped, tag = 'scoped memory for tpu_custom_call.1']
    #allocation5 [shape = 'u8[16384]{0}', space=vmem, size = 0x4000, scoped, tag = 'input window, operand 1']
    #allocation6 [shape = 's32[2]{0}', space=sflag, size = 0x8, scoped, tag = 'scoped memory for tpu_custom_call.1']
    #allocation7 [shape = 'u8[16384]{0}', space=vmem, size = 0x4000, scoped, tag = 'input window, operand 2, single buffered']
    #allocation8 [shape = 'u8[16384]{0}', space=vmem, size = 0x4000, scoped, tag = 'input window, operand 3, single buffered']
    #allocation9 [shape = 's32[1]{0}', space=sflag, size = 0x4, scoped, tag = 'scoped memory for tpu_custom_call.1']
    #allocation10 [shape = 'u8[16384]{0}', space=vmem, size = 0x4000, scoped, tag = 'input window, operand 4, single buffered']
    #allocation11 [shape = 'u8[512]{0}', space=vmem, size = 0x400, scoped, tag = 'input window, operand 5, single buffered']
    #allocation12 [shape = 's32[1]{0}', space=sflag, size = 0x4, scoped, tag = 'scoped memory for tpu_custom_call.1']
    #allocation13 [shape = 'u8[512]{0}', space=vmem, size = 0x400, scoped, tag = 'input window, operand 6, single buffered']
    #allocation14 [shape = 'u8[16384]{0}', space=vmem, size = 0x4000, scoped, tag = 'input window, operand 7, single buffered']
    #allocation15 [shape = 's32[1]{0}', space=sflag, size = 0x4, scoped, tag = 'scoped memory for tpu_custom_call.1']
    #allocation16 [shape = 'u8[512]{0}', space=vmem, size = 0x400, scoped, tag = 'input window, operand 8, single buffered']
    #allocation17 [shape = 'u8[32768]{0}', space=vmem, size = 0x8000, scoped, tag = 'input window, operand 9, single buffered']
    #allocation18 [shape = 's32[1]{0}', space=sflag, size = 0x4, scoped, tag = 'scoped memory for tpu_custom_call.1']
    #allocation19 [shape = 'u8[512]{0}', space=vmem, size = 0x400, scoped, tag = 'input window, operand 10, single buffered']
    #allocation20 [shape = 'u8[512]{0}', space=vmem, size = 0x400, scoped, tag = 'input window, operand 11, single buffered']
    #allocation21 [shape = 's32[1]{0}', space=sflag, size = 0x4, scoped, tag = 'scoped memory for tpu_custom_call.1']
    #allocation22 [shape = 'u8[512]{0}', space=vmem, size = 0x400, scoped, tag = 'input window, operand 12, single buffered']
    #allocation23 [shape = 'u8[8192]{0}', space=vmem, size = 0x2000, scoped, tag = 'output window, operand 0']
    %18 = vsyncpa [#allocation3], 0
    %s19 = scalar_lea.sflag [#allocation3], 1
    %20 = vsyncpa %s19, 0
    %21 = vsyncpa [#allocation6], 0
    %s22 = scalar_lea.sflag [#allocation6], 1
    %23 = vsyncpa %s22, 0
    %24 = vsyncpa [#allocation9], 0
    %25 = vsyncpa [#allocation12], 0
    %26 = vsyncpa [#allocation15], 0
    %27 = vsyncpa [#allocation18], 0
    %28 = vsyncpa [#allocation21], 0
    %29 = vsyncpa [#allocation4], 0
    %s30 = scalar_lea.sflag [#allocation4], 1
    %31 = vsyncpa %s30, 0
    loop: start=0, step=1, limit=4
    $region2: #{tpu_custom_call.1} parent=1 // loop_pre_header
      _
    $region3: #{tpu_custom_call.1} parent=1 // loop_header
      %s33 = sphi 0, %s37
      %p34 = scmp.ge.s32.totalorder %s33, 4
      %s43 = sphi 0, %s45
      %s46 = sphi 0, %s43
      %s47 = sphi 0, %s46
      %s63 = sphi 0, %s47
      %s69 = sphi 0, %s71
      %s72 = sphi 0, %s69
      %s73 = sphi 0, %s72
      %s89 = sphi 0, %s73
      %s93 = sphi 0, %s93
      %s95 = sphi 0, %s93
      %s96 = sphi 0, %s95
      %s110 = sphi 0, %s96
      %s114 = sphi 0, %s114
      %s116 = sphi 0, %s114
      %s117 = sphi 0, %s116
      %s131 = sphi 0, %s117
      %s135 = sphi 0, %s135
      %s137 = sphi 0, %s135
      %s138 = sphi 0, %s137
      %s152 = sphi 0, %s138
      %s156 = sphi 0, %s156
      %s158 = sphi 0, %s156
      %s159 = sphi 0, %s158
      %s173 = sphi 0, %s159
      %s177 = sphi 0, %s177
      %s179 = sphi 0, %s177
      %s180 = sphi 0, %s179
      %s194 = sphi 0, %s180
      %s198 = sphi 0, %s198
      %s200 = sphi 0, %s198
      %s201 = sphi 0, %s200
      %s215 = sphi 0, %s201
      %s219 = sphi 0, %s219
      %s221 = sphi 0, %s219
      %s222 = sphi 0, %s221
      %s236 = sphi 0, %s222
      %s240 = sphi 0, %s240
      %s242 = sphi 0, %s240
      %s243 = sphi 0, %s242
      %s257 = sphi 0, %s243
      %s261 = sphi 0, %s261
      %s263 = sphi 0, %s261
      %s264 = sphi 0, %s263
      %s278 = sphi 0, %s264
      %s282 = sphi 0, %s282
      %s284 = sphi 0, %s282
      %s285 = sphi 0, %s284
      %s299 = sphi 0, %s285
      %s303 = sphi 0, %s303
      %s305 = sphi 0, %s303
      %s306 = sphi 0, %s305
      %s320 = sphi 0, %s306
      %s326 = sphi 0, %s328
      %s329 = sphi 0, %s326
      %s330 = sphi 0, %s329
      %s346 = sphi 0, %s330
    $region4: #{tpu_custom_call.1} parent=1 // loop_header_branch
      %36 = sbr.rel (%p34) target = $region8
    $region5: #{tpu_custom_call.1} parent=1 // loop_body
      %s38 = ssub.s32 %s33, 1
      %s39 = ssub.s32 %s33, 2
      %s40 = sadd.s32 %s33, 1
      %s41 = ssub.s32 %s33, %s40
      %p42 = scmp.eq.s32.totalorder %s41, 0
      %s44 = sadd.s32 %s43, 1
      %s45 = scalar_select %p42, %s43, %s44
      %p48 = pneg %p42
      %p49 = scmp.eq.s32.totalorder %s33, 1
      %p50 = por %p48, %p49
      %p51 = scmp.ne.s32.totalorder %s43, %s46
      %p52 = scmp.eq.s32.totalorder %s33, 0
      %p53 = por %p51, %p52
      %p54 = scmp.ne.s32.totalorder %s43, %s46
      %p55 = scmp.eq.s32.totalorder %s38, 1
      %p56 = por %p54, %p55
      %p57 = scmp.ne.s32.totalorder %s46, %s47
      %p58 = scmp.eq.s32.totalorder %s38, 0
      %p59 = por %p57, %p58
      %p60 = scmp.ne.s32.totalorder %s46, %s47
      %p61 = scmp.eq.s32.totalorder %s39, 1
      %p62 = por %p60, %p61
      %p64 = scmp.ne.s32.totalorder %s47, %s63
      %p65 = scmp.eq.s32.totalorder %s39, 0
      %p66 = por %p64, %p65
      %s67 = ssub.s32 %s33, %s40
      %p68 = scmp.eq.s32.totalorder %s67, 0
      %s70 = sadd.s32 %s69, 1
      %s71 = scalar_select %p68, %s69, %s70
      %p74 = pneg %p68
      %p75 = scmp.eq.s32.totalorder %s33, 1
      %p76 = por %p74, %p75
      %p77 = scmp.ne.s32.totalorder %s69, %s72
      %p78 = scmp.eq.s32.totalorder %s33, 0
      %p79 = por %p77, %p78
      %p80 = scmp.ne.s32.totalorder %s69, %s72
      %p81 = scmp.eq.s32.totalorder %s38, 1
      %p82 = por %p80, %p81
      %p83 = scmp.ne.s32.totalorder %s72, %s73
      %p84 = scmp.eq.s32.totalorder %s38, 0
      %p85 = por %p83, %p84
      %p86 = scmp.ne.s32.totalorder %s72, %s73
      %p87 = scmp.eq.s32.totalorder %s39, 1
      %p88 = por %p86, %p87
      %p90 = scmp.ne.s32.totalorder %s73, %s89
      %p91 = scmp.eq.s32.totalorder %s39, 0
      %p92 = por %p90, %p91
      %s94 = sadd.s32 %s93, 1
      %p97 = scmp.eq.s32.totalorder %s33, 1
      %p98 = scmp.ne.s32.totalorder %s93, %s95
      %p99 = scmp.eq.s32.totalorder %s33, 0
      %p100 = por %p98, %p99
      %p101 = scmp.ne.s32.totalorder %s93, %s95
      %p102 = scmp.eq.s32.totalorder %s38, 1
      %p103 = por %p101, %p102
      %p104 = scmp.ne.s32.totalorder %s95, %s96
      %p105 = scmp.eq.s32.totalorder %s38, 0
      %p106 = por %p104, %p105
      %p107 = scmp.ne.s32.totalorder %s95, %s96
      %p108 = scmp.eq.s32.totalorder %s39, 1
      %p109 = por %p107, %p108
      %p111 = scmp.ne.s32.totalorder %s96, %s110
      %p112 = scmp.eq.s32.totalorder %s39, 0
      %p113 = por %p111, %p112
      %s115 = sadd.s32 %s114, 1
      %p118 = scmp.eq.s32.totalorder %s33, 1
      %p119 = scmp.ne.s32.totalorder %s114, %s116
      %p120 = scmp.eq.s32.totalorder %s33, 0
      %p121 = por %p119, %p120
      %p122 = scmp.ne.s32.totalorder %s114, %s116
      %p123 = scmp.eq.s32.totalorder %s38, 1
      %p124 = por %p122, %p123
      %p125 = scmp.ne.s32.totalorder %s116, %s117
      %p126 = scmp.eq.s32.totalorder %s38, 0
      %p127 = por %p125, %p126
      %p128 = scmp.ne.s32.totalorder %s116, %s117
      %p129 = scmp.eq.s32.totalorder %s39, 1
      %p130 = por %p128, %p129
      %p132 = scmp.ne.s32.totalorder %s117, %s131
      %p133 = scmp.eq.s32.totalorder %s39, 0
      %p134 = por %p132, %p133
      %s136 = sadd.s32 %s135, 1
      %p139 = scmp.eq.s32.totalorder %s33, 1
      %p140 = scmp.ne.s32.totalorder %s135, %s137
      %p141 = scmp.eq.s32.totalorder %s33, 0
      %p142 = por %p140, %p141
      %p143 = scmp.ne.s32.totalorder %s135, %s137
      %p144 = scmp.eq.s32.totalorder %s38, 1
      %p145 = por %p143, %p144
      %p146 = scmp.ne.s32.totalorder %s137, %s138
      %p147 = scmp.eq.s32.totalorder %s38, 0
      %p148 = por %p146, %p147
      %p149 = scmp.ne.s32.totalorder %s137, %s138
      %p150 = scmp.eq.s32.totalorder %s39, 1
      %p151 = por %p149, %p150
      %p153 = scmp.ne.s32.totalorder %s138, %s152
      %p154 = scmp.eq.s32.totalorder %s39, 0
      %p155 = por %p153, %p154
      %s157 = sadd.s32 %s156, 1
      %p160 = scmp.eq.s32.totalorder %s33, 1
      %p161 = scmp.ne.s32.totalorder %s156, %s158
      %p162 = scmp.eq.s32.totalorder %s33, 0
      %p163 = por %p161, %p162
      %p164 = scmp.ne.s32.totalorder %s156, %s158
      %p165 = scmp.eq.s32.totalorder %s38, 1
      %p166 = por %p164, %p165
      %p167 = scmp.ne.s32.totalorder %s158, %s159
      %p168 = scmp.eq.s32.totalorder %s38, 0
      %p169 = por %p167, %p168
      %p170 = scmp.ne.s32.totalorder %s158, %s159
      %p171 = scmp.eq.s32.totalorder %s39, 1
      %p172 = por %p170, %p171
      %p174 = scmp.ne.s32.totalorder %s159, %s173
      %p175 = scmp.eq.s32.totalorder %s39, 0
      %p176 = por %p174, %p175
      %s178 = sadd.s32 %s177, 1
      %p181 = scmp.eq.s32.totalorder %s33, 1
      %p182 = scmp.ne.s32.totalorder %s177, %s179
      %p183 = scmp.eq.s32.totalorder %s33, 0
      %p184 = por %p182, %p183
      %p185 = scmp.ne.s32.totalorder %s177, %s179
      %p186 = scmp.eq.s32.totalorder %s38, 1
      %p187 = por %p185, %p186
      %p188 = scmp.ne.s32.totalorder %s179, %s180
      %p189 = scmp.eq.s32.totalorder %s38, 0
      %p190 = por %p188, %p189
      %p191 = scmp.ne.s32.totalorder %s179, %s180
      %p192 = scmp.eq.s32.totalorder %s39, 1
      %p193 = por %p191, %p192
      %p195 = scmp.ne.s32.totalorder %s180, %s194
      %p196 = scmp.eq.s32.totalorder %s39, 0
      %p197 = por %p195, %p196
      %s199 = sadd.s32 %s198, 1
      %p202 = scmp.eq.s32.totalorder %s33, 1
      %p203 = scmp.ne.s32.totalorder %s198, %s200
      %p204 = scmp.eq.s32.totalorder %s33, 0
      %p205 = por %p203, %p204
      %p206 = scmp.ne.s32.totalorder %s198, %s200
      %p207 = scmp.eq.s32.totalorder %s38, 1
      %p208 = por %p206, %p207
      %p209 = scmp.ne.s32.totalorder %s200, %s201
      %p210 = scmp.eq.s32.totalorder %s38, 0
      %p211 = por %p209, %p210
      %p212 = scmp.ne.s32.totalorder %s200, %s201
      %p213 = scmp.eq.s32.totalorder %s39, 1
      %p214 = por %p212, %p213
      %p216 = scmp.ne.s32.totalorder %s201, %s215
      %p217 = scmp.eq.s32.totalorder %s39, 0
      %p218 = por %p216, %p217
      %s220 = sadd.s32 %s219, 1
      %p223 = scmp.eq.s32.totalorder %s33, 1
      %p224 = scmp.ne.s32.totalorder %s219, %s221
      %p225 = scmp.eq.s32.totalorder %s33, 0
      %p226 = por %p224, %p225
      %p227 = scmp.ne.s32.totalorder %s219, %s221
      %p228 = scmp.eq.s32.totalorder %s38, 1
      %p229 = por %p227, %p228
      %p230 = scmp.ne.s32.totalorder %s221, %s222
      %p231 = scmp.eq.s32.totalorder %s38, 0
      %p232 = por %p230, %p231
      %p233 = scmp.ne.s32.totalorder %s221, %s222
      %p234 = scmp.eq.s32.totalorder %s39, 1
      %p235 = por %p233, %p234
      %p237 = scmp.ne.s32.totalorder %s222, %s236
      %p238 = scmp.eq.s32.totalorder %s39, 0
      %p239 = por %p237, %p238
      %s241 = sadd.s32 %s240, 1
      %p244 = scmp.eq.s32.totalorder %s33, 1
      %p245 = scmp.ne.s32.totalorder %s240, %s242
      %p246 = scmp.eq.s32.totalorder %s33, 0
      %p247 = por %p245, %p246
      %p248 = scmp.ne.s32.totalorder %s240, %s242
      %p249 = scmp.eq.s32.totalorder %s38, 1
      %p250 = por %p248, %p249
      %p251 = scmp.ne.s32.totalorder %s242, %s243
      %p252 = scmp.eq.s32.totalorder %s38, 0
      %p253 = por %p251, %p252
      %p254 = scmp.ne.s32.totalorder %s242, %s243
      %p255 = scmp.eq.s32.totalorder %s39, 1
      %p256 = por %p254, %p255
      %p258 = scmp.ne.s32.totalorder %s243, %s257
      %p259 = scmp.eq.s32.totalorder %s39, 0
      %p260 = por %p258, %p259
      %s262 = sadd.s32 %s261, 1
      %p265 = scmp.eq.s32.totalorder %s33, 1
      %p266 = scmp.ne.s32.totalorder %s261, %s263
      %p267 = scmp.eq.s32.totalorder %s33, 0
      %p268 = por %p266, %p267
      %p269 = scmp.ne.s32.totalorder %s261, %s263
      %p270 = scmp.eq.s32.totalorder %s38, 1
      %p271 = por %p269, %p270
      %p272 = scmp.ne.s32.totalorder %s263, %s264
      %p273 = scmp.eq.s32.totalorder %s38, 0
      %p274 = por %p272, %p273
      %p275 = scmp.ne.s32.totalorder %s263, %s264
      %p276 = scmp.eq.s32.totalorder %s39, 1
      %p277 = por %p275, %p276
      %p279 = scmp.ne.s32.totalorder %s264, %s278
      %p280 = scmp.eq.s32.totalorder %s39, 0
      %p281 = por %p279, %p280
      %s283 = sadd.s32 %s282, 1
      %p286 = scmp.eq.s32.totalorder %s33, 1
      %p287 = scmp.ne.s32.totalorder %s282, %s284
      %p288 = scmp.eq.s32.totalorder %s33, 0
      %p289 = por %p287, %p288
      %p290 = scmp.ne.s32.totalorder %s282, %s284
      %p291 = scmp.eq.s32.totalorder %s38, 1
      %p292 = por %p290, %p291
      %p293 = scmp.ne.s32.totalorder %s284, %s285
      %p294 = scmp.eq.s32.totalorder %s38, 0
      %p295 = por %p293, %p294
      %p296 = scmp.ne.s32.totalorder %s284, %s285
      %p297 = scmp.eq.s32.totalorder %s39, 1
      %p298 = por %p296, %p297
      %p300 = scmp.ne.s32.totalorder %s285, %s299
      %p301 = scmp.eq.s32.totalorder %s39, 0
      %p302 = por %p300, %p301
      %s304 = sadd.s32 %s303, 1
      %p307 = scmp.eq.s32.totalorder %s33, 1
      %p308 = scmp.ne.s32.totalorder %s303, %s305
      %p309 = scmp.eq.s32.totalorder %s33, 0
      %p310 = por %p308, %p309
      %p311 = scmp.ne.s32.totalorder %s303, %s305
      %p312 = scmp.eq.s32.totalorder %s38, 1
      %p313 = por %p311, %p312
      %p314 = scmp.ne.s32.totalorder %s305, %s306
      %p315 = scmp.eq.s32.totalorder %s38, 0
      %p316 = por %p314, %p315
      %p317 = scmp.ne.s32.totalorder %s305, %s306
      %p318 = scmp.eq.s32.totalorder %s39, 1
      %p319 = por %p317, %p318
      %p321 = scmp.ne.s32.totalorder %s306, %s320
      %p322 = scmp.eq.s32.totalorder %s39, 0
      %p323 = por %p321, %p322
      %s324 = ssub.s32 %s33, %s40
      %p325 = scmp.eq.s32.totalorder %s324, 0
      %s327 = sadd.s32 %s326, 1
      %s328 = scalar_select %p325, %s326, %s327
      %p331 = pneg %p325
      %p332 = scmp.eq.s32.totalorder %s33, 1
      %p333 = por %p331, %p332
      %p334 = scmp.ne.s32.totalorder %s326, %s329
      %p335 = scmp.eq.s32.totalorder %s33, 0
      %p336 = por %p334, %p335
      %p337 = scmp.ne.s32.totalorder %s326, %s329
      %p338 = scmp.eq.s32.totalorder %s38, 1
      %p339 = por %p337, %p338
      %p340 = scmp.ne.s32.totalorder %s329, %s330
      %p341 = scmp.eq.s32.totalorder %s38, 0
      %p342 = por %p340, %p341
      %p343 = scmp.ne.s32.totalorder %s329, %s330
      %p344 = scmp.eq.s32.totalorder %s39, 1
      %p345 = por %p343, %p344
      %p347 = scmp.ne.s32.totalorder %s330, %s346
      %p348 = scmp.eq.s32.totalorder %s39, 0
      %p349 = por %p347, %p348
      %p350 = scmp.le.s32.totalorder 1, %s33
      %p351 = scmp.lt.s32.totalorder %s33, 3
      %p352 = pnand %p350, %p351
      %p353 = pneg %p352
      // Predicated region
      $region9: #{tpu_custom_call.1} parent=5 // pred_check
        _
      $region10: #{tpu_custom_call.1} parent=5 // pred_check_branch
        %355 = sbr.rel (%p352) target = $region12
      $region11: #{tpu_custom_call.1} parent=5 // pred_region
        %s356 = ssub.s32 %s33, 1
        // Predicated region
        $region13: #{tpu_custom_call.1} parent=11 // pred_check
          %p357 = pneg %p106
        $region14: #{tpu_custom_call.1} parent=11 // pred_check_branch
          %359 = sbr.rel (%p357) target = $region16
        $region15: #{tpu_custom_call.1} parent=11 // pred_region
          %s361 = ssub.s32 512, 512
          %362 = vsyncadd [#allocation6], %s361
          %s363 = sshll.u32 [#allocation7], 4
          %s364 = int_to_ptr.vmem [resolvable:$true] %s363
          %369 = dma.hbm_to_vmem [thread:$0]  %s2, 512, %s364, [#allocation6], 128, 128, 8
        $region16: #{tpu_custom_call.1} parent=11 // pred_fallthru
          _
        // Predicated region
        $region17: #{tpu_custom_call.1} parent=11 // pred_check
          %p370 = pneg %p127
        $region18: #{tpu_custom_call.1} parent=11 // pred_check_branch
          %372 = sbr.rel (%p370) target = $region20
        $region19: #{tpu_custom_call.1} parent=11 // pred_region
          %s374 = ssub.s32 512, 512
          %375 = vsyncadd [#allocation9], %s374
          %s376 = sshll.u32 [#allocation8], 4
          %s377 = int_to_ptr.vmem [resolvable:$true] %s376
          %382 = dma.hbm_to_vmem [thread:$0]  %s3, 512, %s377, [#allocation9], 128, 128, 8
        $region20: #{tpu_custom_call.1} parent=11 // pred_fallthru
          _
        // Predicated region
        $region21: #{tpu_custom_call.1} parent=11 // pred_check
          %p383 = pneg %p148
        $region22: #{tpu_custom_call.1} parent=11 // pred_check_branch
          %385 = sbr.rel (%p383) target = $region24
        $region23: #{tpu_custom_call.1} parent=11 // pred_region
          %s387 = ssub.s32 512, 512
          %388 = vsyncadd [#allocation9], %s387
          %s389 = sshll.u32 [#allocation10], 4
          %s390 = int_to_ptr.vmem [resolvable:$true] %s389
          %395 = dma.hbm_to_vmem [thread:$0]  %s4, 512, %s390, [#allocation9], 128, 128, 8
        $region24: #{tpu_custom_call.1} parent=11 // pred_fallthru
          _
        // Predicated region
        $region25: #{tpu_custom_call.1} parent=11 // pred_check
          %p396 = pneg %p169
        $region26: #{tpu_custom_call.1} parent=11 // pred_check_branch
          %398 = sbr.rel (%p396) target = $region28
        $region27: #{tpu_custom_call.1} parent=11 // pred_region
          %s400 = ssub.s32 16, 16
          %401 = vsyncadd [#allocation12], %s400
          %s403 = sshll.u32 [#allocation11], 4
          %s404 = int_to_ptr.vmem [resolvable:$true] %s403
          %406 = dma.hbm_to_vmem [thread:$0]  %s5, 16, %s404, [#allocation12]
        $region28: #{tpu_custom_call.1} parent=11 // pred_fallthru
          _
        // Predicated region
        $region29: #{tpu_custom_call.1} parent=11 // pred_check
          %p407 = pneg %p190
        $region30: #{tpu_custom_call.1} parent=11 // pred_check_branch
          %409 = sbr.rel (%p407) target = $region32
        $region31: #{tpu_custom_call.1} parent=11 // pred_region
          %s411 = ssub.s32 16, 16
          %412 = vsyncadd [#allocation12], %s411
          %s414 = sshll.u32 [#allocation13], 4
          %s415 = int_to_ptr.vmem [resolvable:$true] %s414
          %417 = dma.hbm_to_vmem [thread:$0]  %s6, 16, %s415, [#allocation12]
        $region32: #{tpu_custom_call.1} parent=11 // pred_fallthru
          _
        // Predicated region
        $region33: #{tpu_custom_call.1} parent=11 // pred_check
          %p418 = pneg %p211
        $region34: #{tpu_custom_call.1} parent=11 // pred_check_branch
          %420 = sbr.rel (%p418) target = $region36
        $region35: #{tpu_custom_call.1} parent=11 // pred_region
          %s422 = ssub.s32 512, 512
          %423 = vsyncadd [#allocation15], %s422
          %s424 = sshll.u32 [#allocation14], 4
          %s425 = int_to_ptr.vmem [resolvable:$true] %s424
          %430 = dma.hbm_to_vmem [thread:$0]  %s7, 512, %s425, [#allocation15], 128, 128, 8
        $region36: #{tpu_custom_call.1} parent=11 // pred_fallthru
          _
        // Predicated region
        $region37: #{tpu_custom_call.1} parent=11 // pred_check
          %p431 = pneg %p232
        $region38: #{tpu_custom_call.1} parent=11 // pred_check_branch
          %433 = sbr.rel (%p431) target = $region40
        $region39: #{tpu_custom_call.1} parent=11 // pred_region
          %s435 = ssub.s32 16, 16
          %436 = vsyncadd [#allocation15], %s435
          %s438 = sshll.u32 [#allocation16], 4
          %s439 = int_to_ptr.vmem [resolvable:$true] %s438
          %441 = dma.hbm_to_vmem [thread:$0]  %s8, 16, %s439, [#allocation15]
        $region40: #{tpu_custom_call.1} parent=11 // pred_fallthru
          _
        // Predicated region
        $region41: #{tpu_custom_call.1} parent=11 // pred_check
          %p442 = pneg %p253
        $region42: #{tpu_custom_call.1} parent=11 // pred_check_branch
          %444 = sbr.rel (%p442) target = $region44
        $region43: #{tpu_custom_call.1} parent=11 // pred_region
          %s446 = ssub.s32 1024, 1024
          %447 = vsyncadd [#allocation18], %s446
          %s448 = sshll.u32 [#allocation17], 4
          %s449 = int_to_ptr.vmem [resolvable:$true] %s448
          %454 = dma.hbm_to_vmem [thread:$0]  %s9, 1024, %s449, [#allocation18], 128, 128, 8
        $region44: #{tpu_custom_call.1} parent=11 // pred_fallthru
          _
        // Predicated region
        $region45: #{tpu_custom_call.1} parent=11 // pred_check
          %p455 = pneg %p274
        $region46: #{tpu_custom_call.1} parent=11 // pred_check_branch
          %457 = sbr.rel (%p455) target = $region48
        $region47: #{tpu_custom_call.1} parent=11 // pred_region
          %s459 = ssub.s32 16, 16
          %460 = vsyncadd [#allocation18], %s459
          %s462 = sshll.u32 [#allocation19], 4
          %s463 = int_to_ptr.vmem [resolvable:$true] %s462
          %465 = dma.hbm_to_vmem [thread:$0]  %s10, 16, %s463, [#allocation18]
        $region48: #{tpu_custom_call.1} parent=11 // pred_fallthru
          _
        // Predicated region
        $region49: #{tpu_custom_call.1} parent=11 // pred_check
          %p466 = pneg %p295
        $region50: #{tpu_custom_call.1} parent=11 // pred_check_branch
          %468 = sbr.rel (%p466) target = $region52
        $region51: #{tpu_custom_call.1} parent=11 // pred_region
          %s470 = ssub.s32 16, 16
          %471 = vsyncadd [#allocation21], %s470
          %s473 = sshll.u32 [#allocation20], 4
          %s474 = int_to_ptr.vmem [resolvable:$true] %s473
          %476 = dma.hbm_to_vmem [thread:$0]  %s11, 16, %s474, [#allocation21]
        $region52: #{tpu_custom_call.1} parent=11 // pred_fallthru
          _
        // Predicated region
        $region53: #{tpu_custom_call.1} parent=11 // pred_check
          %p477 = pneg %p316
        $region54: #{tpu_custom_call.1} parent=11 // pred_check_branch
          %479 = sbr.rel (%p477) target = $region56
        $region55: #{tpu_custom_call.1} parent=11 // pred_region
          %s481 = ssub.s32 16, 16
          %482 = vsyncadd [#allocation21], %s481
          %s484 = sshll.u32 [#allocation22], 4
          %s485 = int_to_ptr.vmem [resolvable:$true] %s484
          %487 = dma.hbm_to_vmem [thread:$0]  %s12, 16, %s485, [#allocation21]
        $region56: #{tpu_custom_call.1} parent=11 // pred_fallthru
          _
      $region12: #{tpu_custom_call.1} parent=5 // pred_fallthru
        _
      %p488 = scmp.lt.s32.totalorder %s33, 2
      // Predicated region
      $region57: #{tpu_custom_call.1} parent=5 // pred_check
        %p489 = pneg %p488
      $region58: #{tpu_custom_call.1} parent=5 // pred_check_branch
        %491 = sbr.rel (%p489) target = $region60
      $region59: #{tpu_custom_call.1} parent=5 // pred_region
        // Predicated region
        $region61: #{tpu_custom_call.1} parent=59 // pred_check
          %p492 = pneg %p53
        $region62: #{tpu_custom_call.1} parent=59 // pred_check_branch
          %494 = sbr.rel (%p492) target = $region64
        $region63: #{tpu_custom_call.1} parent=59 // pred_region
          %s495 = sand.u32 %s43, 1
          %s496 = scalar_lea.sflag [#allocation3], %s495
          %s497 = sand.u32 %s43, 1
          %s498 = smul.addr %s497, 8
          %s499 = scalar_lea.vmem [#allocation2], %s498
          %s501 = ssub.s32 128, 128
          %502 = vsyncadd %s496, %s501
          %s503 = smul.addr %s33, 128
          %s504 = scalar_lea.hbm %s0, %s503
          %s506 = sshll.u32 %s499, 4
          %s507 = int_to_ptr.vmem [resolvable:$true] %s506
          %509 = dma.hbm_to_vmem [thread:$0]  %s504, 128, %s507, %s496
        $region64: #{tpu_custom_call.1} parent=59 // pred_fallthru
          _
        // Predicated region
        $region65: #{tpu_custom_call.1} parent=59 // pred_check
          %p510 = pneg %p79
        $region66: #{tpu_custom_call.1} parent=59 // pred_check_branch
          %512 = sbr.rel (%p510) target = $region68
        $region67: #{tpu_custom_call.1} parent=59 // pred_region
          %s513 = sand.u32 %s33, 1
          %s514 = scalar_lea.sflag [#allocation6], %s513
          %s515 = sand.u32 %s69, 1
          %s516 = smul.addr %s515, 16
          %s517 = scalar_lea.vmem [#allocation5], %s516
          %s519 = ssub.s32 256, 256
          %520 = vsyncadd %s514, %s519
          %s521 = smul.addr %s33, 2
          %s522 = smul.addr %s521, 128
          %s523 = scalar_lea.hbm %s1, %s522
          %s524 = sshll.u32 %s517, 4
          %s525 = int_to_ptr.vmem [resolvable:$true] %s524
          %530 = dma.hbm_to_vmem [thread:$0]  %s523, 256, %s525, %s514, 128, 128, 8
        $region68: #{tpu_custom_call.1} parent=59 // pred_fallthru
          _
      $region60: #{tpu_custom_call.1} parent=5 // pred_fallthru
        _
      %p531 = scmp.le.s32.totalorder 1, %s33
      %p532 = scmp.lt.s32.totalorder %s33, 3
      %p533 = pnand %p531, %p532
      %p534 = pneg %p533
      // Predicated region
      $region69: #{tpu_custom_call.1} parent=5 // pred_check
        _
      $region70: #{tpu_custom_call.1} parent=5 // pred_check_branch
        %536 = sbr.rel (%p533) target = $region72
      $region71: #{tpu_custom_call.1} parent=5 // pred_region
        %s537 = ssub.s32 %s33, 1
        %s538 = sand.u32 %s46, 1
        %s539 = scalar_lea.sflag [#allocation3], %s538
        %s540 = sand.u32 %s46, 1
        %s541 = smul.addr %s540, 8
        %s542 = scalar_lea.vmem [#allocation2], %s541
        // Predicated region
        $region73: #{tpu_custom_call.1} parent=71 // pred_check
          %p543 = pneg %p59
        $region74: #{tpu_custom_call.1} parent=71 // pred_check_branch
          %545 = sbr.rel (%p543) target = $region76
        $region75: #{tpu_custom_call.1} parent=71 // pred_region
          %546 = dma.done %s539, 128
        $region76: #{tpu_custom_call.1} parent=71 // pred_fallthru
          _
        %s547 = sand.u32 %s38, 1
        %s548 = scalar_lea.sflag [#allocation6], %s547
        %s549 = sand.u32 %s72, 1
        %s550 = smul.addr %s549, 16
        %s551 = scalar_lea.vmem [#allocation5], %s550
        // Predicated region
        $region77: #{tpu_custom_call.1} parent=71 // pred_check
          %p552 = pneg %p85
        $region78: #{tpu_custom_call.1} parent=71 // pred_check_branch
          %554 = sbr.rel (%p552) target = $region80
        $region79: #{tpu_custom_call.1} parent=71 // pred_region
          %555 = dma.done %s548, 256
        $region80: #{tpu_custom_call.1} parent=71 // pred_fallthru
          _
        // Predicated region
        $region81: #{tpu_custom_call.1} parent=71 // pred_check
          %p556 = pneg %p106
        $region82: #{tpu_custom_call.1} parent=71 // pred_check_branch
          %558 = sbr.rel (%p556) target = $region84
        $region83: #{tpu_custom_call.1} parent=71 // pred_region
          %559 = dma.done [#allocation6], 512
        $region84: #{tpu_custom_call.1} parent=71 // pred_fallthru
          _
        // Predicated region
        $region85: #{tpu_custom_call.1} parent=71 // pred_check
          %p560 = pneg %p127
        $region86: #{tpu_custom_call.1} parent=71 // pred_check_branch
          %562 = sbr.rel (%p560) target = $region88
        $region87: #{tpu_custom_call.1} parent=71 // pred_region
          %563 = dma.done [#allocation9], 512
        $region88: #{tpu_custom_call.1} parent=71 // pred_fallthru
          _
        // Predicated region
        $region89: #{tpu_custom_call.1} parent=71 // pred_check
          %p564 = pneg %p148
        $region90: #{tpu_custom_call.1} parent=71 // pred_check_branch
          %566 = sbr.rel (%p564) target = $region92
        $region91: #{tpu_custom_call.1} parent=71 // pred_region
          %567 = dma.done [#allocation9], 512
        $region92: #{tpu_custom_call.1} parent=71 // pred_fallthru
          _
        // Predicated region
        $region93: #{tpu_custom_call.1} parent=71 // pred_check
          %p568 = pneg %p169
        $region94: #{tpu_custom_call.1} parent=71 // pred_check_branch
          %570 = sbr.rel (%p568) target = $region96
        $region95: #{tpu_custom_call.1} parent=71 // pred_region
          %571 = dma.done [#allocation12], 16
        $region96: #{tpu_custom_call.1} parent=71 // pred_fallthru
          _
        // Predicated region
        $region97: #{tpu_custom_call.1} parent=71 // pred_check
          %p572 = pneg %p190
        $region98: #{tpu_custom_call.1} parent=71 // pred_check_branch
          %574 = sbr.rel (%p572) target = $region100
        $region99: #{tpu_custom_call.1} parent=71 // pred_region
          %575 = dma.done [#allocation12], 16
        $region100: #{tpu_custom_call.1} parent=71 // pred_fallthru
          _
        // Predicated region
        $region101: #{tpu_custom_call.1} parent=71 // pred_check
          %p576 = pneg %p211
        $region102: #{tpu_custom_call.1} parent=71 // pred_check_branch
          %578 = sbr.rel (%p576) target = $region104
        $region103: #{tpu_custom_call.1} parent=71 // pred_region
          %579 = dma.done [#allocation15], 512
        $region104: #{tpu_custom_call.1} parent=71 // pred_fallthru
          _
        // Predicated region
        $region105: #{tpu_custom_call.1} parent=71 // pred_check
          %p580 = pneg %p232
        $region106: #{tpu_custom_call.1} parent=71 // pred_check_branch
          %582 = sbr.rel (%p580) target = $region108
        $region107: #{tpu_custom_call.1} parent=71 // pred_region
          %583 = dma.done [#allocation15], 16
        $region108: #{tpu_custom_call.1} parent=71 // pred_fallthru
          _
        // Predicated region
        $region109: #{tpu_custom_call.1} parent=71 // pred_check
          %p584 = pneg %p253
        $region110: #{tpu_custom_call.1} parent=71 // pred_check_branch
          %586 = sbr.rel (%p584) target = $region112
        $region111: #{tpu_custom_call.1} parent=71 // pred_region
          %587 = dma.done [#allocation18], 1024
        $region112: #{tpu_custom_call.1} parent=71 // pred_fallthru
          _
        // Predicated region
        $region113: #{tpu_custom_call.1} parent=71 // pred_check
          %p588 = pneg %p274
        $region114: #{tpu_custom_call.1} parent=71 // pred_check_branch
          %590 = sbr.rel (%p588) target = $region116
        $region115: #{tpu_custom_call.1} parent=71 // pred_region
          %591 = dma.done [#allocation18], 16
        $region116: #{tpu_custom_call.1} parent=71 // pred_fallthru
          _
        // Predicated region
        $region117: #{tpu_custom_call.1} parent=71 // pred_check
          %p592 = pneg %p295
        $region118: #{tpu_custom_call.1} parent=71 // pred_check_branch
          %594 = sbr.rel (%p592) target = $region120
        $region119: #{tpu_custom_call.1} parent=71 // pred_region
          %595 = dma.done [#allocation21], 16
        $region120: #{tpu_custom_call.1} parent=71 // pred_fallthru
          _
        // Predicated region
        $region121: #{tpu_custom_call.1} parent=71 // pred_check
          %p596 = pneg %p316
        $region122: #{tpu_custom_call.1} parent=71 // pred_check_branch
          %598 = sbr.rel (%p596) target = $region124
        $region123: #{tpu_custom_call.1} parent=71 // pred_region
          %599 = dma.done [#allocation21], 16
        $region124: #{tpu_custom_call.1} parent=71 // pred_fallthru
          _
        %s600 = sand.u32 %s46, 1
        %s601 = scalar_lea.sflag [#allocation3], %s600
        %s602 = sand.u32 %s46, 1
        %s603 = smul.addr %s602, 8
        %s604 = scalar_lea.vmem [#allocation2], %s603
        %p605 = pneg %p59
        %p606 = pneg %p56
        %s607 = sand.u32 %s38, 1
        %s608 = scalar_lea.sflag [#allocation6], %s607
        %s609 = sand.u32 %s72, 1
        %s610 = smul.addr %s609, 16
        %s611 = scalar_lea.vmem [#allocation5], %s610
        %p612 = pneg %p85
        %p613 = pneg %p82
        %p614 = pneg %p106
        %p615 = pneg %p103
        %p616 = pneg %p127
        %p617 = pneg %p124
        %p618 = pneg %p148
        %p619 = pneg %p145
        %p620 = pneg %p169
        %p621 = pneg %p166
        %p622 = pneg %p190
        %p623 = pneg %p187
        %p624 = pneg %p211
        %p625 = pneg %p208
        %p626 = pneg %p232
        %p627 = pneg %p229
        %p628 = pneg %p253
        %p629 = pneg %p250
        %p630 = pneg %p274
        %p631 = pneg %p271
        %p632 = pneg %p295
        %p633 = pneg %p292
        %p634 = pneg %p316
        %p635 = pneg %p313
        %p636 = pneg %p342
        %p637 = pneg %p339
        %s638 = sand.u32 %s329, 1
        %s639 = scalar_lea.sflag [#allocation4], %s638
        %s640 = sand.u32 %s329, 1
        %s641 = smul.addr %s640, 8
        %s642 = scalar_lea.vmem [#allocation23], %s641
        %v643 = vld [vmem:[%s542] sm:$0xff]
        %v644 = vld [vmem:[%s551] sm:$0xff]
        %v645 = vld [vmem:[%s551 + $0x8] sm:$0xff]
        %v646 = vld [vmem:[#allocation7] sm:$0xff]
        %v647 = vld [vmem:[#allocation7 + $0x8] sm:$0xff]
        %v648 = vld [vmem:[#allocation7 + $0x10] sm:$0xff]
        %v649 = vld [vmem:[#allocation7 + $0x18] sm:$0xff]
        %vm650 = vcmask 261120
        %v652 = vsel %vm650, %v643, 0
        %654 = vmatprep.subr.mxu0 0.0
        %655 = vmatpush1.msra.mxu0 %v646
        %656 = vmatprep.subr.mxu0 0.0
        %657 = vmatpush1.msra.mxu0 %v647
        %658 = vmatprep.subr.mxu0 0.0
        %659 = vmatpush1.msra.mxu0 %v648
        %660 = vmatprep.subr.mxu0 0.0
        %661 = vmatpush1.msra.mxu0 %v649
        %662 = vmatprep.subr.mxu0 0.0
        %663 = vmatpush1.msra.mxu0 0.0
        %664 = vmatprep.subr.mxu0 0.0
        %665 = vmatpush1.msra.mxu0 0.0
        %666 = vmatprep.subr.mxu0 0.0
        %667 = vmatpush1.msra.mxu0 0.0
        %668 = vmatprep.subr.mxu0 0.0
        %669 = vmatpush1.msra.mxu0 0.0
        %670 = vmatprep.subr.mxu0 0.0
        %671 = vmatpush1.msra.mxu0 0.0
        %672 = vmatprep.subr.mxu0 0.0
        %673 = vmatpush1.msra.mxu0 0.0
        %674 = vmatprep.subr.mxu0 0.0
        %675 = vmatpush1.msra.mxu0 0.0
        %676 = vmatprep.subr.mxu0 0.0
        %677 = vmatpush1.msra.mxu0 0.0
        %678 = vmatprep.subr.mxu0 0.0
        %679 = vmatpush1.msra.mxu0 0.0
        %680 = vmatprep.subr.mxu0 0.0
        %681 = vmatpush1.msra.mxu0 0.0
        %682 = vmatprep.subr.mxu0 0.0
        %683 = vmatpush1.msra.mxu0 0.0
        %684 = vmatprep.subr.mxu0 0.0
        %685 = vmatpush1.msra.mxu0 0.0
        %686 = vmatprep.subr.mxu0 0.0
        %687 = vmatpush1.msra.mxu0 0.0
        %688 = vmatprep.subr.mxu0 0.0
        %689 = vmatpush1.msra.mxu0 0.0
        %690 = vmatprep.subr.mxu0 0.0
        %691 = vmatpush1.msra.mxu0 0.0
        %692 = vmatprep.subr.mxu0 0.0
        %693 = vmatpush1.msra.mxu0 0.0
        %694 = vmatprep.subr.mxu0 0.0
        %695 = vmatpush1.msra.mxu0 0.0
        %696 = vmatprep.subr.mxu0 0.0
        %697 = vmatpush1.msra.mxu0 0.0
        %698 = vmatprep.subr.mxu0 0.0
        %699 = vmatpush1.msra.mxu0 0.0
        %700 = vmatprep.subr.mxu0 0.0
        %701 = vmatpush1.msra.mxu0 0.0
        %702 = vmatprep.subr.mxu0 0.0
        %703 = vmatpush1.msra.mxu0 0.0
        %704 = vmatprep.subr.mxu0 0.0
        %705 = vmatpush1.msra.mxu0 0.0
        %706 = vmatprep.subr.mxu0 0.0
        %707 = vmatpush1.msra.mxu0 0.0
        %708 = vmatprep.subr.mxu0 0.0
        %709 = vmatpush1.msra.mxu0 0.0
        %710 = vmatprep.subr.mxu0 0.0
        %711 = vmatpush1.msra.mxu0 0.0
        %712 = vmatprep.subr.mxu0 0.0
        %713 = vmatpush1.msra.mxu0 0.0
        %714 = vmatprep.subr.mxu0 0.0
        %715 = vmatpush1.msra.mxu0 0.0
        %716 = vmatprep.subr.mxu0 0.0
        %717 = vmatpush1.msra.mxu0 0.0
        %718 = vmatprep.mubr.f32.mxu0 0.0
        %719 = vmatmul.mubr.f32.gmra.mrb[0].mxu0 %v652
        %v720 = vpop.f32.mrb[0].mxu0
        %v721 = vadd.f32 0.0, %v720
        %v722 = vpop.f32.mrb[0].mxu0
        %723 = vdwg.mxu0
        %v724 = vld [vmem:[#allocation8] sm:$0xff]
        %v725 = vld [vmem:[#allocation8 + $0x8] sm:$0xff]
        %v726 = vld [vmem:[#allocation8 + $0x10] sm:$0xff]
        %v727 = vld [vmem:[#allocation8 + $0x18] sm:$0xff]
        %v729 = vsel %vm650, %v644, 0
        %v732 = vsel %vm650, %v645, 0
        %734 = vmatprep.subr.mxu0 0.0
        %735 = vmatpush1.msra.mxu0 %v724
        %736 = vmatprep.subr.mxu0 0.0
        %737 = vmatpush1.msra.mxu0 %v725
        %738 = vmatprep.subr.mxu0 0.0
        %739 = vmatpush1.msra.mxu0 %v726
        %740 = vmatprep.subr.mxu0 0.0
        %741 = vmatpush1.msra.mxu0 %v727
        %742 = vmatprep.subr.mxu0 0.0
        %743 = vmatpush1.msra.mxu0 0.0
        %744 = vmatprep.subr.mxu0 0.0
        %745 = vmatpush1.msra.mxu0 0.0
        %746 = vmatprep.subr.mxu0 0.0
        %747 = vmatpush1.msra.mxu0 0.0
        %748 = vmatprep.subr.mxu0 0.0
        %749 = vmatpush1.msra.mxu0 0.0
        %750 = vmatprep.subr.mxu0 0.0
        %751 = vmatpush1.msra.mxu0 0.0
        %752 = vmatprep.subr.mxu0 0.0
        %753 = vmatpush1.msra.mxu0 0.0
        %754 = vmatprep.subr.mxu0 0.0
        %755 = vmatpush1.msra.mxu0 0.0
        %756 = vmatprep.subr.mxu0 0.0
        %757 = vmatpush1.msra.mxu0 0.0
        %758 = vmatprep.subr.mxu0 0.0
        %759 = vmatpush1.msra.mxu0 0.0
        %760 = vmatprep.subr.mxu0 0.0
        %761 = vmatpush1.msra.mxu0 0.0
        %762 = vmatprep.subr.mxu0 0.0
        %763 = vmatpush1.msra.mxu0 0.0
        %764 = vmatprep.subr.mxu0 0.0
        %765 = vmatpush1.msra.mxu0 0.0
        %766 = vmatprep.subr.mxu0 0.0
        %767 = vmatpush1.msra.mxu0 0.0
        %768 = vmatprep.subr.mxu0 0.0
        %769 = vmatpush1.msra.mxu0 0.0
        %770 = vmatprep.subr.mxu0 0.0
        %771 = vmatpush1.msra.mxu0 0.0
        %772 = vmatprep.subr.mxu0 0.0
        %773 = vmatpush1.msra.mxu0 0.0
        %774 = vmatprep.subr.mxu0 0.0
        %775 = vmatpush1.msra.mxu0 0.0
        %776 = vmatprep.subr.mxu0 0.0
        %777 = vmatpush1.msra.mxu0 0.0
        %778 = vmatprep.subr.mxu0 0.0
        %779 = vmatpush1.msra.mxu0 0.0
        %780 = vmatprep.subr.mxu0 0.0
        %781 = vmatpush1.msra.mxu0 0.0
        %782 = vmatprep.subr.mxu0 0.0
        %783 = vmatpush1.msra.mxu0 0.0
        %784 = vmatprep.subr.mxu0 0.0
        %785 = vmatpush1.msra.mxu0 0.0
        %786 = vmatprep.subr.mxu0 0.0
        %787 = vmatpush1.msra.mxu0 0.0
        %788 = vmatprep.subr.mxu0 0.0
        %789 = vmatpush1.msra.mxu0 0.0
        %790 = vmatprep.subr.mxu0 0.0
        %791 = vmatpush1.msra.mxu0 0.0
        %792 = vmatprep.subr.mxu0 0.0
        %793 = vmatpush1.msra.mxu0 0.0
        %794 = vmatprep.subr.mxu0 0.0
        %795 = vmatpush1.msra.mxu0 0.0
        %796 = vmatprep.subr.mxu0 0.0
        %797 = vmatpush1.msra.mxu0 0.0
        %798 = vmatprep.mubr.f32.mxu0 0.0
        %799 = vmatmul.mubr.f32.gmra.mrb[0].mxu0 %v729
        %v800 = vpop.f32.mrb[0].mxu0
        %v801 = vadd.f32 0.0, %v800
        %v802 = vpop.f32.mrb[0].mxu0
        %803 = vmatprep.mubr.f32.mxu0 0.0
        %804 = vmatmul.mubr.f32.gmra.mrb[0].mxu0 %v732
        %v805 = vpop.f32.mrb[0].mxu0
        %v806 = vadd.f32 0.0, %v805
        %v807 = vpop.f32.mrb[0].mxu0
        %808 = vdwg.mxu0
        %v809 = vld [vmem:[#allocation10] sm:$0xff]
        %v810 = vld [vmem:[#allocation10 + $0x8] sm:$0xff]
        %v811 = vld [vmem:[#allocation10 + $0x10] sm:$0xff]
        %v812 = vld [vmem:[#allocation10 + $0x18] sm:$0xff]
        %813 = vmatprep.subr.mxu0 0.0
        %814 = vmatpush1.msra.mxu0 %v809
        %815 = vmatprep.subr.mxu0 0.0
        %816 = vmatpush1.msra.mxu0 %v810
        %817 = vmatprep.subr.mxu0 0.0
        %818 = vmatpush1.msra.mxu0 %v811
        %819 = vmatprep.subr.mxu0 0.0
        %820 = vmatpush1.msra.mxu0 %v812
        %821 = vmatprep.subr.mxu0 0.0
        %822 = vmatpush1.msra.mxu0 0.0
        %823 = vmatprep.subr.mxu0 0.0
        %824 = vmatpush1.msra.mxu0 0.0
        %825 = vmatprep.subr.mxu0 0.0
        %826 = vmatpush1.msra.mxu0 0.0
        %827 = vmatprep.subr.mxu0 0.0
        %828 = vmatpush1.msra.mxu0 0.0
        %829 = vmatprep.subr.mxu0 0.0
        %830 = vmatpush1.msra.mxu0 0.0
        %831 = vmatprep.subr.mxu0 0.0
        %832 = vmatpush1.msra.mxu0 0.0
        %833 = vmatprep.subr.mxu0 0.0
        %834 = vmatpush1.msra.mxu0 0.0
        %835 = vmatprep.subr.mxu0 0.0
        %836 = vmatpush1.msra.mxu0 0.0
        %837 = vmatprep.subr.mxu0 0.0
        %838 = vmatpush1.msra.mxu0 0.0
        %839 = vmatprep.subr.mxu0 0.0
        %840 = vmatpush1.msra.mxu0 0.0
        %841 = vmatprep.subr.mxu0 0.0
        %842 = vmatpush1.msra.mxu0 0.0
        %843 = vmatprep.subr.mxu0 0.0
        %844 = vmatpush1.msra.mxu0 0.0
        %845 = vmatprep.subr.mxu0 0.0
        %846 = vmatpush1.msra.mxu0 0.0
        %847 = vmatprep.subr.mxu0 0.0
        %848 = vmatpush1.msra.mxu0 0.0
        %849 = vmatprep.subr.mxu0 0.0
        %850 = vmatpush1.msra.mxu0 0.0
        %851 = vmatprep.subr.mxu0 0.0
        %852 = vmatpush1.msra.mxu0 0.0
        %853 = vmatprep.subr.mxu0 0.0
        %854 = vmatpush1.msra.mxu0 0.0
        %855 = vmatprep.subr.mxu0 0.0
        %856 = vmatpush1.msra.mxu0 0.0
        %857 = vmatprep.subr.mxu0 0.0
        %858 = vmatpush1.msra.mxu0 0.0
        %859 = vmatprep.subr.mxu0 0.0
        %860 = vmatpush1.msra.mxu0 0.0
        %861 = vmatprep.subr.mxu0 0.0
        %862 = vmatpush1.msra.mxu0 0.0
        %863 = vmatprep.subr.mxu0 0.0
        %864 = vmatpush1.msra.mxu0 0.0
        %865 = vmatprep.subr.mxu0 0.0
        %866 = vmatpush1.msra.mxu0 0.0
        %867 = vmatprep.subr.mxu0 0.0
        %868 = vmatpush1.msra.mxu0 0.0
        %869 = vmatprep.subr.mxu0 0.0
        %870 = vmatpush1.msra.mxu0 0.0
        %871 = vmatprep.subr.mxu0 0.0
        %872 = vmatpush1.msra.mxu0 0.0
        %873 = vmatprep.subr.mxu0 0.0
        %874 = vmatpush1.msra.mxu0 0.0
        %875 = vmatprep.subr.mxu0 0.0
        %876 = vmatpush1.msra.mxu0 0.0
        %877 = vmatprep.mubr.f32.mxu0 0.0
        %878 = vmatmul.mubr.f32.gmra.mrb[0].mxu0 %v729
        %v879 = vpop.f32.mrb[0].mxu0
        %v880 = vadd.f32 0.0, %v879
        %v881 = vpop.f32.mrb[0].mxu0
        %882 = vmatprep.mubr.f32.mxu0 0.0
        %883 = vmatmul.mubr.f32.gmra.mrb[0].mxu0 %v732
        %v884 = vpop.f32.mrb[0].mxu0
        %v885 = vadd.f32 0.0, %v884
        %v886 = vpop.f32.mrb[0].mxu0
        %887 = vdwg.mxu0
        %889 = vrot.lane.b32.xlu0 %v721, 120
        %v890 = vpop.permute.xlu0 %889
        %891 = vrot.lane.b32.xlu0 %v721, 112
        %v892 = vpop.permute.xlu0 %891
        %893 = vrot.lane.b32.xlu0 %v721, 104
        %v894 = vpop.permute.xlu0 %893
        %897 = vrot.lane.b32.xlu0 %v801, 120
        %v898 = vpop.permute.xlu0 %897
        %899 = vrot.lane.b32.xlu0 %v806, 120
        %v900 = vpop.permute.xlu0 %899
        %901 = vrot.lane.b32.xlu0 %v801, 112
        %v902 = vpop.permute.xlu0 %901
        %903 = vrot.lane.b32.xlu0 %v806, 112
        %v904 = vpop.permute.xlu0 %903
        %905 = vrot.lane.b32.xlu0 %v801, 104
        %v906 = vpop.permute.xlu0 %905
        %907 = vrot.lane.b32.xlu0 %v806, 104
        %v908 = vpop.permute.xlu0 %907
        %911 = vrot.lane.b32.xlu0 %v880, 120
        %v912 = vpop.permute.xlu0 %911
        %913 = vrot.lane.b32.xlu0 %v885, 120
        %v914 = vpop.permute.xlu0 %913
        %917 = vrot.lane.b32.xlu0 %v880, 112
        %v918 = vpop.permute.xlu0 %917
        %919 = vrot.lane.b32.xlu0 %v885, 112
        %v920 = vpop.permute.xlu0 %919
        %923 = vrot.lane.b32.xlu0 %v880, 104
        %v924 = vpop.permute.xlu0 %923
        %925 = vrot.lane.b32.xlu0 %v885, 104
        %v926 = vpop.permute.xlu0 %925
        %vm929 = vcmask 64512
        %v930 = vsel %vm929, %v721, 0
        %v932 = vsel %vm929, %v801, 0
        %v934 = vsel %vm929, %v806, 0
        %936 = vmatprep.subr.mxu0 0.0
        %937 = vmatpush1.xpose.msra.mxu0 %v932
        %938 = vmatprep.subr.mxu0 0.0
        %939 = vmatpush1.xpose.msra.mxu0 %v934
        %940 = vmatprep.subr.mxu0 0.0
        %941 = vmatpush1.xpose.msra.mxu0 0.0
        %942 = vmatprep.subr.mxu0 0.0
        %943 = vmatpush1.xpose.msra.mxu0 0.0
        %944 = vmatprep.subr.mxu0 0.0
        %945 = vmatpush1.xpose.msra.mxu0 0.0
        %946 = vmatprep.subr.mxu0 0.0
        %947 = vmatpush1.xpose.msra.mxu0 0.0
        %948 = vmatprep.subr.mxu0 0.0
        %949 = vmatpush1.xpose.msra.mxu0 0.0
        %950 = vmatprep.subr.mxu0 0.0
        %951 = vmatpush1.xpose.msra.mxu0 0.0
        %952 = vmatprep.subr.mxu0 0.0
        %953 = vmatpush1.xpose.msra.mxu0 0.0
        %954 = vmatprep.subr.mxu0 0.0
        %955 = vmatpush1.xpose.msra.mxu0 0.0
        %956 = vmatprep.subr.mxu0 0.0
        %957 = vmatpush1.xpose.msra.mxu0 0.0
        %958 = vmatprep.subr.mxu0 0.0
        %959 = vmatpush1.xpose.msra.mxu0 0.0
        %960 = vmatprep.subr.mxu0 0.0
        %961 = vmatpush1.xpose.msra.mxu0 0.0
        %962 = vmatprep.subr.mxu0 0.0
        %963 = vmatpush1.xpose.msra.mxu0 0.0
        %964 = vmatprep.subr.mxu0 0.0
        %965 = vmatpush1.xpose.msra.mxu0 0.0
        %966 = vmatprep.subr.mxu0 0.0
        %967 = vmatpush1.xpose.msra.mxu0 0.0
        %968 = vmatprep.subr.mxu0 0.0
        %969 = vmatpush1.xpose.msra.mxu0 0.0
        %970 = vmatprep.subr.mxu0 0.0
        %971 = vmatpush1.xpose.msra.mxu0 0.0
        %972 = vmatprep.subr.mxu0 0.0
        %973 = vmatpush1.xpose.msra.mxu0 0.0
        %974 = vmatprep.subr.mxu0 0.0
        %975 = vmatpush1.xpose.msra.mxu0 0.0
        %976 = vmatprep.subr.mxu0 0.0
        %977 = vmatpush1.xpose.msra.mxu0 0.0
        %978 = vmatprep.subr.mxu0 0.0
        %979 = vmatpush1.xpose.msra.mxu0 0.0
        %980 = vmatprep.subr.mxu0 0.0
        %981 = vmatpush1.xpose.msra.mxu0 0.0
        %982 = vmatprep.subr.mxu0 0.0
        %983 = vmatpush1.xpose.msra.mxu0 0.0
        %984 = vmatprep.subr.mxu0 0.0
        %985 = vmatpush1.xpose.msra.mxu0 0.0
        %986 = vmatprep.subr.mxu0 0.0
        %987 = vmatpush1.xpose.msra.mxu0 0.0
        %988 = vmatprep.subr.mxu0 0.0
        %989 = vmatpush1.xpose.msra.mxu0 0.0
        %990 = vmatprep.subr.mxu0 0.0
        %991 = vmatpush1.xpose.msra.mxu0 0.0
        %992 = vmatprep.subr.mxu0 0.0
        %993 = vmatpush1.xpose.msra.mxu0 0.0
        %994 = vmatprep.subr.mxu0 0.0
        %995 = vmatpush1.xpose.msra.mxu0 0.0
        %996 = vmatprep.subr.mxu0 0.0
        %997 = vmatpush1.xpose.msra.mxu0 0.0
        %998 = vmatprep.subr.mxu0 0.0
        %999 = vmatpush1.xpose.msra.mxu0 0.0
        %1000 = vmatprep.mubr.f32.mxu0 0.0
        %1001 = vmatmul.mubr.f32.gmra.mrb[0].mxu0 %v930
        %v1002 = vpop.f32.mrb[0].mxu0
        %v1003 = vadd.f32 0.0, %v1002
        %v1004 = vpop.f32.mrb[0].mxu0
        %1005 = vdwg.mxu0
        %v1006 = vsel %vm929, %v890, 0
        %v1008 = vsel %vm929, %v898, 0
        %v1010 = vsel %vm929, %v900, 0
        %1012 = vmatprep.subr.mxu0 0.0
        %1013 = vmatpush1.xpose.msra.mxu0 %v1008
        %1014 = vmatprep.subr.mxu0 0.0
        %1015 = vmatpush1.xpose.msra.mxu0 %v1010
        %1016 = vmatprep.subr.mxu0 0.0
        %1017 = vmatpush1.xpose.msra.mxu0 0.0
        %1018 = vmatprep.subr.mxu0 0.0
        %1019 = vmatpush1.xpose.msra.mxu0 0.0
        %1020 = vmatprep.subr.mxu0 0.0
        %1021 = vmatpush1.xpose.msra.mxu0 0.0
        %1022 = vmatprep.subr.mxu0 0.0
        %1023 = vmatpush1.xpose.msra.mxu0 0.0
        %1024 = vmatprep.subr.mxu0 0.0
        %1025 = vmatpush1.xpose.msra.mxu0 0.0
        %1026 = vmatprep.subr.mxu0 0.0
        %1027 = vmatpush1.xpose.msra.mxu0 0.0
        %1028 = vmatprep.subr.mxu0 0.0
        %1029 = vmatpush1.xpose.msra.mxu0 0.0
        %1030 = vmatprep.subr.mxu0 0.0
        %1031 = vmatpush1.xpose.msra.mxu0 0.0
        %1032 = vmatprep.subr.mxu0 0.0
        %1033 = vmatpush1.xpose.msra.mxu0 0.0
        %1034 = vmatprep.subr.mxu0 0.0
        %1035 = vmatpush1.xpose.msra.mxu0 0.0
        %1036 = vmatprep.subr.mxu0 0.0
        %1037 = vmatpush1.xpose.msra.mxu0 0.0
        %1038 = vmatprep.subr.mxu0 0.0
        %1039 = vmatpush1.xpose.msra.mxu0 0.0
        %1040 = vmatprep.subr.mxu0 0.0
        %1041 = vmatpush1.xpose.msra.mxu0 0.0
        %1042 = vmatprep.subr.mxu0 0.0
        %1043 = vmatpush1.xpose.msra.mxu0 0.0
        %1044 = vmatprep.subr.mxu0 0.0
        %1045 = vmatpush1.xpose.msra.mxu0 0.0
        %1046 = vmatprep.subr.mxu0 0.0
        %1047 = vmatpush1.xpose.msra.mxu0 0.0
        %1048 = vmatprep.subr.mxu0 0.0
        %1049 = vmatpush1.xpose.msra.mxu0 0.0
        %1050 = vmatprep.subr.mxu0 0.0
        %1051 = vmatpush1.xpose.msra.mxu0 0.0
        %1052 = vmatprep.subr.mxu0 0.0
        %1053 = vmatpush1.xpose.msra.mxu0 0.0
        %1054 = vmatprep.subr.mxu0 0.0
        %1055 = vmatpush1.xpose.msra.mxu0 0.0
        %1056 = vmatprep.subr.mxu0 0.0
        %1057 = vmatpush1.xpose.msra.mxu0 0.0
        %1058 = vmatprep.subr.mxu0 0.0
        %1059 = vmatpush1.xpose.msra.mxu0 0.0
        %1060 = vmatprep.subr.mxu0 0.0
        %1061 = vmatpush1.xpose.msra.mxu0 0.0
        %1062 = vmatprep.subr.mxu0 0.0
        %1063 = vmatpush1.xpose.msra.mxu0 0.0
        %1064 = vmatprep.subr.mxu0 0.0
        %1065 = vmatpush1.xpose.msra.mxu0 0.0
        %1066 = vmatprep.subr.mxu0 0.0
        %1067 = vmatpush1.xpose.msra.mxu0 0.0
        %1068 = vmatprep.subr.mxu0 0.0
        %1069 = vmatpush1.xpose.msra.mxu0 0.0
        %1070 = vmatprep.subr.mxu0 0.0
        %1071 = vmatpush1.xpose.msra.mxu0 0.0
        %1072 = vmatprep.subr.mxu0 0.0
        %1073 = vmatpush1.xpose.msra.mxu0 0.0
        %1074 = vmatprep.subr.mxu0 0.0
        %1075 = vmatpush1.xpose.msra.mxu0 0.0
        %1076 = vmatprep.mubr.f32.mxu0 0.0
        %1077 = vmatmul.mubr.f32.gmra.mrb[0].mxu0 %v1006
        %v1078 = vpop.f32.mrb[0].mxu0
        %v1079 = vadd.f32 0.0, %v1078
        %v1080 = vpop.f32.mrb[0].mxu0
        %1081 = vdwg.mxu0
        %v1082 = vsel %vm929, %v892, 0
        %v1084 = vsel %vm929, %v902, 0
        %v1086 = vsel %vm929, %v904, 0
        %1088 = vmatprep.subr.mxu0 0.0
        %1089 = vmatpush1.xpose.msra.mxu0 %v1084
        %1090 = vmatprep.subr.mxu0 0.0
        %1091 = vmatpush1.xpose.msra.mxu0 %v1086
        %1092 = vmatprep.subr.mxu0 0.0
        %1093 = vmatpush1.xpose.msra.mxu0 0.0
        %1094 = vmatprep.subr.mxu0 0.0
        %1095 = vmatpush1.xpose.msra.mxu0 0.0
        %1096 = vmatprep.subr.mxu0 0.0
        %1097 = vmatpush1.xpose.msra.mxu0 0.0
        %1098 = vmatprep.subr.mxu0 0.0
        %1099 = vmatpush1.xpose.msra.mxu0 0.0
        %1100 = vmatprep.subr.mxu0 0.0
        %1101 = vmatpush1.xpose.msra.mxu0 0.0
        %1102 = vmatprep.subr.mxu0 0.0
        %1103 = vmatpush1.xpose.msra.mxu0 0.0
        %1104 = vmatprep.subr.mxu0 0.0
        %1105 = vmatpush1.xpose.msra.mxu0 0.0
        %1106 = vmatprep.subr.mxu0 0.0
        %1107 = vmatpush1.xpose.msra.mxu0 0.0
        %1108 = vmatprep.subr.mxu0 0.0
        %1109 = vmatpush1.xpose.msra.mxu0 0.0
        %1110 = vmatprep.subr.mxu0 0.0
        %1111 = vmatpush1.xpose.msra.mxu0 0.0
        %1112 = vmatprep.subr.mxu0 0.0
        %1113 = vmatpush1.xpose.msra.mxu0 0.0
        %1114 = vmatprep.subr.mxu0 0.0
        %1115 = vmatpush1.xpose.msra.mxu0 0.0
        %1116 = vmatprep.subr.mxu0 0.0
        %1117 = vmatpush1.xpose.msra.mxu0 0.0
        %1118 = vmatprep.subr.mxu0 0.0
        %1119 = vmatpush1.xpose.msra.mxu0 0.0
        %1120 = vmatprep.subr.mxu0 0.0
        %1121 = vmatpush1.xpose.msra.mxu0 0.0
        %1122 = vmatprep.subr.mxu0 0.0
        %1123 = vmatpush1.xpose.msra.mxu0 0.0
        %1124 = vmatprep.subr.mxu0 0.0
        %1125 = vmatpush1.xpose.msra.mxu0 0.0
        %1126 = vmatprep.subr.mxu0 0.0
        %1127 = vmatpush1.xpose.msra.mxu0 0.0
        %1128 = vmatprep.subr.mxu0 0.0
        %1129 = vmatpush1.xpose.msra.mxu0 0.0
        %1130 = vmatprep.subr.mxu0 0.0
        %1131 = vmatpush1.xpose.msra.mxu0 0.0
        %1132 = vmatprep.subr.mxu0 0.0
        %1133 = vmatpush1.xpose.msra.mxu0 0.0
        %1134 = vmatprep.subr.mxu0 0.0
        %1135 = vmatpush1.xpose.msra.mxu0 0.0
        %1136 = vmatprep.subr.mxu0 0.0
        %1137 = vmatpush1.xpose.msra.mxu0 0.0
        %1138 = vmatprep.subr.mxu0 0.0
        %1139 = vmatpush1.xpose.msra.mxu0 0.0
        %1140 = vmatprep.subr.mxu0 0.0
        %1141 = vmatpush1.xpose.msra.mxu0 0.0
        %1142 = vmatprep.subr.mxu0 0.0
        %1143 = vmatpush1.xpose.msra.mxu0 0.0
        %1144 = vmatprep.subr.mxu0 0.0
        %1145 = vmatpush1.xpose.msra.mxu0 0.0
        %1146 = vmatprep.subr.mxu0 0.0
        %1147 = vmatpush1.xpose.msra.mxu0 0.0
        %1148 = vmatprep.subr.mxu0 0.0
        %1149 = vmatpush1.xpose.msra.mxu0 0.0
        %1150 = vmatprep.subr.mxu0 0.0
        %1151 = vmatpush1.xpose.msra.mxu0 0.0
        %1152 = vmatprep.mubr.f32.mxu0 0.0
        %1153 = vmatmul.mubr.f32.gmra.mrb[0].mxu0 %v1082
        %v1154 = vpop.f32.mrb[0].mxu0
        %v1155 = vadd.f32 0.0, %v1154
        %v1156 = vpop.f32.mrb[0].mxu0
        %1157 = vdwg.mxu0
        %v1158 = vsel %vm929, %v894, 0
        %v1160 = vsel %vm929, %v906, 0
        %v1162 = vsel %vm929, %v908, 0
        %1164 = vmatprep.subr.mxu0 0.0
        %1165 = vmatpush1.xpose.msra.mxu0 %v1160
        %1166 = vmatprep.subr.mxu0 0.0
        %1167 = vmatpush1.xpose.msra.mxu0 %v1162
        %1168 = vmatprep.subr.mxu0 0.0
        %1169 = vmatpush1.xpose.msra.mxu0 0.0
        %1170 = vmatprep.subr.mxu0 0.0
        %1171 = vmatpush1.xpose.msra.mxu0 0.0
        %1172 = vmatprep.subr.mxu0 0.0
        %1173 = vmatpush1.xpose.msra.mxu0 0.0
        %1174 = vmatprep.subr.mxu0 0.0
        %1175 = vmatpush1.xpose.msra.mxu0 0.0
        %1176 = vmatprep.subr.mxu0 0.0
        %1177 = vmatpush1.xpose.msra.mxu0 0.0
        %1178 = vmatprep.subr.mxu0 0.0
        %1179 = vmatpush1.xpose.msra.mxu0 0.0
        %1180 = vmatprep.subr.mxu0 0.0
        %1181 = vmatpush1.xpose.msra.mxu0 0.0
        %1182 = vmatprep.subr.mxu0 0.0
        %1183 = vmatpush1.xpose.msra.mxu0 0.0
        %1184 = vmatprep.subr.mxu0 0.0
        %1185 = vmatpush1.xpose.msra.mxu0 0.0
        %1186 = vmatprep.subr.mxu0 0.0
        %1187 = vmatpush1.xpose.msra.mxu0 0.0
        %1188 = vmatprep.subr.mxu0 0.0
        %1189 = vmatpush1.xpose.msra.mxu0 0.0
        %1190 = vmatprep.subr.mxu0 0.0
        %1191 = vmatpush1.xpose.msra.mxu0 0.0
        %1192 = vmatprep.subr.mxu0 0.0
        %1193 = vmatpush1.xpose.msra.mxu0 0.0
        %1194 = vmatprep.subr.mxu0 0.0
        %1195 = vmatpush1.xpose.msra.mxu0 0.0
        %1196 = vmatprep.subr.mxu0 0.0
        %1197 = vmatpush1.xpose.msra.mxu0 0.0
        %1198 = vmatprep.subr.mxu0 0.0
        %1199 = vmatpush1.xpose.msra.mxu0 0.0
        %1200 = vmatprep.subr.mxu0 0.0
        %1201 = vmatpush1.xpose.msra.mxu0 0.0
        %1202 = vmatprep.subr.mxu0 0.0
        %1203 = vmatpush1.xpose.msra.mxu0 0.0
        %1204 = vmatprep.subr.mxu0 0.0
        %1205 = vmatpush1.xpose.msra.mxu0 0.0
        %1206 = vmatprep.subr.mxu0 0.0
        %1207 = vmatpush1.xpose.msra.mxu0 0.0
        %1208 = vmatprep.subr.mxu0 0.0
        %1209 = vmatpush1.xpose.msra.mxu0 0.0
        %1210 = vmatprep.subr.mxu0 0.0
        %1211 = vmatpush1.xpose.msra.mxu0 0.0
        %1212 = vmatprep.subr.mxu0 0.0
        %1213 = vmatpush1.xpose.msra.mxu0 0.0
        %1214 = vmatprep.subr.mxu0 0.0
        %1215 = vmatpush1.xpose.msra.mxu0 0.0
        %1216 = vmatprep.subr.mxu0 0.0
        %1217 = vmatpush1.xpose.msra.mxu0 0.0
        %1218 = vmatprep.subr.mxu0 0.0
        %1219 = vmatpush1.xpose.msra.mxu0 0.0
        %1220 = vmatprep.subr.mxu0 0.0
        %1221 = vmatpush1.xpose.msra.mxu0 0.0
        %1222 = vmatprep.subr.mxu0 0.0
        %1223 = vmatpush1.xpose.msra.mxu0 0.0
        %1224 = vmatprep.subr.mxu0 0.0
        %1225 = vmatpush1.xpose.msra.mxu0 0.0
        %1226 = vmatprep.subr.mxu0 0.0
        %1227 = vmatpush1.xpose.msra.mxu0 0.0
        %1228 = vmatprep.mubr.f32.mxu0 0.0
        %1229 = vmatmul.mubr.f32.gmra.mrb[0].mxu0 %v1158
        %v1230 = vpop.f32.mrb[0].mxu0
        %v1231 = vadd.f32 0.0, %v1230
        %v1232 = vpop.f32.mrb[0].mxu0
        %1233 = vdwg.mxu0
        %v1234 = vmul.f32 %v1003, 0.17677669
        %v1235 = vmul.f32 %v1079, 0.17677669
        %v1236 = vmul.f32 %v1155, 0.17677669
        %v1237 = vmul.f32 %v1231, 0.17677669
        %vm1238 = vcmask 130048
        %v1239 = vsel %vm1238, %v1234, -inf
        %1240 = vmax.xlane.f32.xlu0 %v1239
        %v1241 = vpop.xlane.xlu0 %1240
        %v1242 = vsel %vm1238, %v1235, -inf
        %1243 = vmax.xlane.f32.xlu0 %v1242
        %v1244 = vpop.xlane.xlu0 %1243
        %v1245 = vsel %vm1238, %v1236, -inf
        %1246 = vmax.xlane.f32.xlu0 %v1245
        %v1247 = vpop.xlane.xlu0 %1246
        %v1248 = vsel %vm1238, %v1237, -inf
        %1249 = vmax.xlane.f32.xlu0 %v1248
        %v1250 = vpop.xlane.xlu0 %1249
        %v1251 = vsub.f32 %v1234, %v1241
        %v1252 = vsub.f32 %v1235, %v1244
        %v1253 = vsub.f32 %v1236, %v1247
        %v1254 = vsub.f32 %v1237, %v1250
        %v1255 = vmul.f32 %v1251, 1.442695
        %v1256 = vpow.pop %v1255
        %v1257 = vmul.f32 %v1252, 1.442695
        %v1258 = vpow.pop %v1257
        %v1259 = vmul.f32 %v1253, 1.442695
        %v1260 = vpow.pop %v1259
        %v1261 = vmul.f32 %v1254, 1.442695
        %v1262 = vpow.pop %v1261
        %v1263 = vsel %vm1238, %v1256, 0.0
        %1264 = vadd.xlane.f32.xlu0 %v1263
        %v1265 = vpop.xlane.xlu0 %1264
        %v1266 = vsel %vm1238, %v1258, 0.0
        %1267 = vadd.xlane.f32.xlu0 %v1266
        %v1268 = vpop.xlane.xlu0 %1267
        %v1269 = vsel %vm1238, %v1260, 0.0
        %1270 = vadd.xlane.f32.xlu0 %v1269
        %v1271 = vpop.xlane.xlu0 %1270
        %v1272 = vsel %vm1238, %v1262, 0.0
        %1273 = vadd.xlane.f32.xlu0 %v1272
        %v1274 = vpop.xlane.xlu0 %1273
        %v1275 = vrcp.pop %v1265
        %v1276 = vrcp.pop %v1268
        %v1277 = vrcp.pop %v1271
        %v1278 = vrcp.pop %v1274
        %v1279 = vmul.f32 %v1256, %v1275
        %v1280 = vmul.f32 %v1258, %v1276
        %v1281 = vmul.f32 %v1260, %v1277
        %v1282 = vmul.f32 %v1262, %v1278
        %v1284 = vsel %vm1238, %v1279, 0
        %1286 = vmatprep.subr.mxu0 0.0
        %1287 = vmatpush1.msra.mxu0 %v880
        %1288 = vmatprep.subr.mxu0 0.0
        %1289 = vmatpush1.msra.mxu0 %v885
        %1290 = vmatprep.subr.mxu0 0.0
        %1291 = vmatpush1.msra.mxu0 0.0
        %1292 = vmatprep.subr.mxu0 0.0
        %1293 = vmatpush1.msra.mxu0 0.0
        %1294 = vmatprep.subr.mxu0 0.0
        %1295 = vmatpush1.msra.mxu0 0.0
        %1296 = vmatprep.subr.mxu0 0.0
        %1297 = vmatpush1.msra.mxu0 0.0
        %1298 = vmatprep.subr.mxu0 0.0
        %1299 = vmatpush1.msra.mxu0 0.0
        %1300 = vmatprep.subr.mxu0 0.0
        %1301 = vmatpush1.msra.mxu0 0.0
        %1302 = vmatprep.subr.mxu0 0.0
        %1303 = vmatpush1.msra.mxu0 0.0
        %1304 = vmatprep.subr.mxu0 0.0
        %1305 = vmatpush1.msra.mxu0 0.0
        %1306 = vmatprep.subr.mxu0 0.0
        %1307 = vmatpush1.msra.mxu0 0.0
        %1308 = vmatprep.subr.mxu0 0.0
        %1309 = vmatpush1.msra.mxu0 0.0
        %1310 = vmatprep.subr.mxu0 0.0
        %1311 = vmatpush1.msra.mxu0 0.0
        %1312 = vmatprep.subr.mxu0 0.0
        %1313 = vmatpush1.msra.mxu0 0.0
        %1314 = vmatprep.subr.mxu0 0.0
        %1315 = vmatpush1.msra.mxu0 0.0
        %1316 = vmatprep.subr.mxu0 0.0
        %1317 = vmatpush1.msra.mxu0 0.0
        %1318 = vmatprep.subr.mxu0 0.0
        %1319 = vmatpush1.msra.mxu0 0.0
        %1320 = vmatprep.subr.mxu0 0.0
        %1321 = vmatpush1.msra.mxu0 0.0
        %1322 = vmatprep.subr.mxu0 0.0
        %1323 = vmatpush1.msra.mxu0 0.0
        %1324 = vmatprep.subr.mxu0 0.0
        %1325 = vmatpush1.msra.mxu0 0.0
        %1326 = vmatprep.subr.mxu0 0.0
        %1327 = vmatpush1.msra.mxu0 0.0
        %1328 = vmatprep.subr.mxu0 0.0
        %1329 = vmatpush1.msra.mxu0 0.0
        %1330 = vmatprep.subr.mxu0 0.0
        %1331 = vmatpush1.msra.mxu0 0.0
        %1332 = vmatprep.subr.mxu0 0.0
        %1333 = vmatpush1.msra.mxu0 0.0
        %1334 = vmatprep.subr.mxu0 0.0
        %1335 = vmatpush1.msra.mxu0 0.0
        %1336 = vmatprep.subr.mxu0 0.0
        %1337 = vmatpush1.msra.mxu0 0.0
        %1338 = vmatprep.subr.mxu0 0.0
        %1339 = vmatpush1.msra.mxu0 0.0
        %1340 = vmatprep.subr.mxu0 0.0
        %1341 = vmatpush1.msra.mxu0 0.0
        %1342 = vmatprep.subr.mxu0 0.0
        %1343 = vmatpush1.msra.mxu0 0.0
        %1344 = vmatprep.subr.mxu0 0.0
        %1345 = vmatpush1.msra.mxu0 0.0
        %1346 = vmatprep.subr.mxu0 0.0
        %1347 = vmatpush1.msra.mxu0 0.0
        %1348 = vmatprep.subr.mxu0 0.0
        %1349 = vmatpush1.msra.mxu0 0.0
        %1350 = vmatprep.mubr.f32.mxu0 0.0
        %1351 = vmatmul.mubr.f32.gmra.mrb[0].mxu0 %v1284
        %v1352 = vpop.f32.mrb[0].mxu0
        %v1353 = vadd.f32 0.0, %v1352
        %v1354 = vpop.f32.mrb[0].mxu0
        %1355 = vdwg.mxu0
        %v1357 = vsel %vm1238, %v1280, 0
        %1359 = vmatprep.subr.mxu0 0.0
        %1360 = vmatpush1.msra.mxu0 %v912
        %1361 = vmatprep.subr.mxu0 0.0
        %1362 = vmatpush1.msra.mxu0 %v914
        %1363 = vmatprep.subr.mxu0 0.0
        %1364 = vmatpush1.msra.mxu0 0.0
        %1365 = vmatprep.subr.mxu0 0.0
        %1366 = vmatpush1.msra.mxu0 0.0
        %1367 = vmatprep.subr.mxu0 0.0
        %1368 = vmatpush1.msra.mxu0 0.0
        %1369 = vmatprep.subr.mxu0 0.0
        %1370 = vmatpush1.msra.mxu0 0.0
        %1371 = vmatprep.subr.mxu0 0.0
        %1372 = vmatpush1.msra.mxu0 0.0
        %1373 = vmatprep.subr.mxu0 0.0
        %1374 = vmatpush1.msra.mxu0 0.0
        %1375 = vmatprep.subr.mxu0 0.0
        %1376 = vmatpush1.msra.mxu0 0.0
        %1377 = vmatprep.subr.mxu0 0.0
        %1378 = vmatpush1.msra.mxu0 0.0
        %1379 = vmatprep.subr.mxu0 0.0
        %1380 = vmatpush1.msra.mxu0 0.0
        %1381 = vmatprep.subr.mxu0 0.0
        %1382 = vmatpush1.msra.mxu0 0.0
        %1383 = vmatprep.subr.mxu0 0.0
        %1384 = vmatpush1.msra.mxu0 0.0
        %1385 = vmatprep.subr.mxu0 0.0
        %1386 = vmatpush1.msra.mxu0 0.0
        %1387 = vmatprep.subr.mxu0 0.0
        %1388 = vmatpush1.msra.mxu0 0.0
        %1389 = vmatprep.subr.mxu0 0.0
        %1390 = vmatpush1.msra.mxu0 0.0
        %1391 = vmatprep.subr.mxu0 0.0
        %1392 = vmatpush1.msra.mxu0 0.0
        %1393 = vmatprep.subr.mxu0 0.0
        %1394 = vmatpush1.msra.mxu0 0.0
        %1395 = vmatprep.subr.mxu0 0.0
        %1396 = vmatpush1.msra.mxu0 0.0
        %1397 = vmatprep.subr.mxu0 0.0
        %1398 = vmatpush1.msra.mxu0 0.0
        %1399 = vmatprep.subr.mxu0 0.0
        %1400 = vmatpush1.msra.mxu0 0.0
        %1401 = vmatprep.subr.mxu0 0.0
        %1402 = vmatpush1.msra.mxu0 0.0
        %1403 = vmatprep.subr.mxu0 0.0
        %1404 = vmatpush1.msra.mxu0 0.0
        %1405 = vmatprep.subr.mxu0 0.0
        %1406 = vmatpush1.msra.mxu0 0.0
        %1407 = vmatprep.subr.mxu0 0.0
        %1408 = vmatpush1.msra.mxu0 0.0
        %1409 = vmatprep.subr.mxu0 0.0
        %1410 = vmatpush1.msra.mxu0 0.0
        %1411 = vmatprep.subr.mxu0 0.0
        %1412 = vmatpush1.msra.mxu0 0.0
        %1413 = vmatprep.subr.mxu0 0.0
        %1414 = vmatpush1.msra.mxu0 0.0
        %1415 = vmatprep.subr.mxu0 0.0
        %1416 = vmatpush1.msra.mxu0 0.0
        %1417 = vmatprep.subr.mxu0 0.0
        %1418 = vmatpush1.msra.mxu0 0.0
        %1419 = vmatprep.subr.mxu0 0.0
        %1420 = vmatpush1.msra.mxu0 0.0
        %1421 = vmatprep.subr.mxu0 0.0
        %1422 = vmatpush1.msra.mxu0 0.0
        %1423 = vmatprep.mubr.f32.mxu0 0.0
        %1424 = vmatmul.mubr.f32.gmra.mrb[0].mxu0 %v1357
        %v1425 = vpop.f32.mrb[0].mxu0
        %v1426 = vadd.f32 0.0, %v1425
        %v1427 = vpop.f32.mrb[0].mxu0
        %1428 = vdwg.mxu0
        %v1430 = vsel %vm1238, %v1281, 0
        %1432 = vmatprep.subr.mxu0 0.0
        %1433 = vmatpush1.msra.mxu0 %v918
        %1434 = vmatprep.subr.mxu0 0.0
        %1435 = vmatpush1.msra.mxu0 %v920
        %1436 = vmatprep.subr.mxu0 0.0
        %1437 = vmatpush1.msra.mxu0 0.0
        %1438 = vmatprep.subr.mxu0 0.0
        %1439 = vmatpush1.msra.mxu0 0.0
        %1440 = vmatprep.subr.mxu0 0.0
        %1441 = vmatpush1.msra.mxu0 0.0
        %1442 = vmatprep.subr.mxu0 0.0
        %1443 = vmatpush1.msra.mxu0 0.0
        %1444 = vmatprep.subr.mxu0 0.0
        %1445 = vmatpush1.msra.mxu0 0.0
        %1446 = vmatprep.subr.mxu0 0.0
        %1447 = vmatpush1.msra.mxu0 0.0
        %1448 = vmatprep.subr.mxu0 0.0
        %1449 = vmatpush1.msra.mxu0 0.0
        %1450 = vmatprep.subr.mxu0 0.0
        %1451 = vmatpush1.msra.mxu0 0.0
        %1452 = vmatprep.subr.mxu0 0.0
        %1453 = vmatpush1.msra.mxu0 0.0
        %1454 = vmatprep.subr.mxu0 0.0
        %1455 = vmatpush1.msra.mxu0 0.0
        %1456 = vmatprep.subr.mxu0 0.0
        %1457 = vmatpush1.msra.mxu0 0.0
        %1458 = vmatprep.subr.mxu0 0.0
        %1459 = vmatpush1.msra.mxu0 0.0
        %1460 = vmatprep.subr.mxu0 0.0
        %1461 = vmatpush1.msra.mxu0 0.0
        %1462 = vmatprep.subr.mxu0 0.0
        %1463 = vmatpush1.msra.mxu0 0.0
        %1464 = vmatprep.subr.mxu0 0.0
        %1465 = vmatpush1.msra.mxu0 0.0
        %1466 = vmatprep.subr.mxu0 0.0
        %1467 = vmatpush1.msra.mxu0 0.0
        %1468 = vmatprep.subr.mxu0 0.0
        %1469 = vmatpush1.msra.mxu0 0.0
        %1470 = vmatprep.subr.mxu0 0.0
        %1471 = vmatpush1.msra.mxu0 0.0
        %1472 = vmatprep.subr.mxu0 0.0
        %1473 = vmatpush1.msra.mxu0 0.0
        %1474 = vmatprep.subr.mxu0 0.0
        %1475 = vmatpush1.msra.mxu0 0.0
        %1476 = vmatprep.subr.mxu0 0.0
        %1477 = vmatpush1.msra.mxu0 0.0
        %1478 = vmatprep.subr.mxu0 0.0
        %1479 = vmatpush1.msra.mxu0 0.0
        %1480 = vmatprep.subr.mxu0 0.0
        %1481 = vmatpush1.msra.mxu0 0.0
        %1482 = vmatprep.subr.mxu0 0.0
        %1483 = vmatpush1.msra.mxu0 0.0
        %1484 = vmatprep.subr.mxu0 0.0
        %1485 = vmatpush1.msra.mxu0 0.0
        %1486 = vmatprep.subr.mxu0 0.0
        %1487 = vmatpush1.msra.mxu0 0.0
        %1488 = vmatprep.subr.mxu0 0.0
        %1489 = vmatpush1.msra.mxu0 0.0
        %1490 = vmatprep.subr.mxu0 0.0
        %1491 = vmatpush1.msra.mxu0 0.0
        %1492 = vmatprep.subr.mxu0 0.0
        %1493 = vmatpush1.msra.mxu0 0.0
        %1494 = vmatprep.subr.mxu0 0.0
        %1495 = vmatpush1.msra.mxu0 0.0
        %1496 = vmatprep.mubr.f32.mxu0 0.0
        %1497 = vmatmul.mubr.f32.gmra.mrb[0].mxu0 %v1430
        %v1498 = vpop.f32.mrb[0].mxu0
        %v1499 = vadd.f32 0.0, %v1498
        %v1500 = vpop.f32.mrb[0].mxu0
        %1501 = vdwg.mxu0
        %v1503 = vsel %vm1238, %v1282, 0
        %1505 = vmatprep.subr.mxu0 0.0
        %1506 = vmatpush1.msra.mxu0 %v924
        %1507 = vmatprep.subr.mxu0 0.0
        %1508 = vmatpush1.msra.mxu0 %v926
        %1509 = vmatprep.subr.mxu0 0.0
        %1510 = vmatpush1.msra.mxu0 0.0
        %1511 = vmatprep.subr.mxu0 0.0
        %1512 = vmatpush1.msra.mxu0 0.0
        %1513 = vmatprep.subr.mxu0 0.0
        %1514 = vmatpush1.msra.mxu0 0.0
        %1515 = vmatprep.subr.mxu0 0.0
        %1516 = vmatpush1.msra.mxu0 0.0
        %1517 = vmatprep.subr.mxu0 0.0
        %1518 = vmatpush1.msra.mxu0 0.0
        %1519 = vmatprep.subr.mxu0 0.0
        %1520 = vmatpush1.msra.mxu0 0.0
        %1521 = vmatprep.subr.mxu0 0.0
        %1522 = vmatpush1.msra.mxu0 0.0
        %1523 = vmatprep.subr.mxu0 0.0
        %1524 = vmatpush1.msra.mxu0 0.0
        %1525 = vmatprep.subr.mxu0 0.0
        %1526 = vmatpush1.msra.mxu0 0.0
        %1527 = vmatprep.subr.mxu0 0.0
        %1528 = vmatpush1.msra.mxu0 0.0
        %1529 = vmatprep.subr.mxu0 0.0
        %1530 = vmatpush1.msra.mxu0 0.0
        %1531 = vmatprep.subr.mxu0 0.0
        %1532 = vmatpush1.msra.mxu0 0.0
        %1533 = vmatprep.subr.mxu0 0.0
        %1534 = vmatpush1.msra.mxu0 0.0
        %1535 = vmatprep.subr.mxu0 0.0
        %1536 = vmatpush1.msra.mxu0 0.0
        %1537 = vmatprep.subr.mxu0 0.0
        %1538 = vmatpush1.msra.mxu0 0.0
        %1539 = vmatprep.subr.mxu0 0.0
        %1540 = vmatpush1.msra.mxu0 0.0
        %1541 = vmatprep.subr.mxu0 0.0
        %1542 = vmatpush1.msra.mxu0 0.0
        %1543 = vmatprep.subr.mxu0 0.0
        %1544 = vmatpush1.msra.mxu0 0.0
        %1545 = vmatprep.subr.mxu0 0.0
        %1546 = vmatpush1.msra.mxu0 0.0
        %1547 = vmatprep.subr.mxu0 0.0
        %1548 = vmatpush1.msra.mxu0 0.0
        %1549 = vmatprep.subr.mxu0 0.0
        %1550 = vmatpush1.msra.mxu0 0.0
        %1551 = vmatprep.subr.mxu0 0.0
        %1552 = vmatpush1.msra.mxu0 0.0
        %1553 = vmatprep.subr.mxu0 0.0
        %1554 = vmatpush1.msra.mxu0 0.0
        %1555 = vmatprep.subr.mxu0 0.0
        %1556 = vmatpush1.msra.mxu0 0.0
        %1557 = vmatprep.subr.mxu0 0.0
        %1558 = vmatpush1.msra.mxu0 0.0
        %1559 = vmatprep.subr.mxu0 0.0
        %1560 = vmatpush1.msra.mxu0 0.0
        %1561 = vmatprep.subr.mxu0 0.0
        %1562 = vmatpush1.msra.mxu0 0.0
        %1563 = vmatprep.subr.mxu0 0.0
        %1564 = vmatpush1.msra.mxu0 0.0
        %1565 = vmatprep.subr.mxu0 0.0
        %1566 = vmatpush1.msra.mxu0 0.0
        %1567 = vmatprep.subr.mxu0 0.0
        %1568 = vmatpush1.msra.mxu0 0.0
        %1569 = vmatprep.mubr.f32.mxu0 0.0
        %1570 = vmatmul.mubr.f32.gmra.mrb[0].mxu0 %v1503
        %v1571 = vpop.f32.mrb[0].mxu0
        %v1572 = vadd.f32 0.0, %v1571
        %v1573 = vpop.f32.mrb[0].mxu0
        %1574 = vdwg.mxu0
        %1576 = vrot.lane.b32.xlu0 %v1426, 8
        %v1577 = vpop.permute.xlu0 %1576
        %1580 = vrot.lane.b32.xlu0 %v1499, 16
        %v1581 = vpop.permute.xlu0 %1580
        %1584 = vrot.lane.b32.xlu0 %v1572, 24
        %v1585 = vpop.permute.xlu0 %1584
        %v1587 = vsel %vm929, %v1353, %v1577
        %v1588 = vsel %vm1238, %v1587, %v1581
        %vm1589 = vcmask 195584
        %v1590 = vsel %vm1589, %v1588, %v1585
        %v1591 = vadd.f32 %v1590, %v643
        %v1592 = vld [vmem:[#allocation11] sm:$0x1]
        %v1593 = vld [vmem:[#allocation13] sm:$0x1]
        %v1594 = vsel %vm650, %v1591, 0.0
        %1595 = vadd.xlane.f32.xlu0 %v1594
        %v1596 = vpop.xlane.xlu0 %1595
        %v1597 = vmul.f32 %v1596, 0.03125
        %v1598 = vmul.f32 %v1591, %v1591
        %v1599 = vsel %vm650, %v1598, 0.0
        %1600 = vadd.xlane.f32.xlu0 %v1599
        %v1601 = vpop.xlane.xlu0 %1600
        %v1602 = vmul.f32 %v1601, 0.03125
        %v1603 = vmul.f32 %v1597, %v1597
        %v1604 = vsub.f32 %v1602, %v1603
        %v1605 = vmul.f32 %v1604, 1.032258
        %v1606 = vmax.f32 %v1605, 0.0
        %v1607 = vrsqrt.pop %v1606
        %v1608 = vmul.f32 %v1606, %v1607
        %vm1609 = vcmp.eq.f32.partialorder %v1606, inf
        %v1610 = vsel %vm1609, %v1606, %v1608
        %vm1611 = vcmp.eq.f32.partialorder %v1606, 0.0
        %v1612 = vand.u32 %v1606, 2147483648
        %v1613 = vsel %vm1611, %v1612, %v1610
        %v1614 = vsub.f32 %v1591, %v1597
        %v1615 = vadd.f32 %v1613, 0.001
        %v1616 = vrcp.pop %v1615
        %v1617 = vmul.f32 %v1614, %v1616
        %v1619 = vlaneseq
        %v1620 = vshrl.u32 %v1619, 7
        %v1621 = vsub.s32 0, %v1620
        %v1622 = vrot.slane %v1592, %v1621
        %v1624 = vmul.f32 %v1617, %v1622
        %v1626 = vlaneseq
        %v1627 = vshrl.u32 %v1626, 7
        %v1628 = vsub.s32 0, %v1627
        %v1629 = vrot.slane %v1593, %v1628
        %v1631 = vadd.f32 %v1624, %v1629
        %v1632 = vld [vmem:[#allocation14] sm:$0xff]
        %v1633 = vld [vmem:[#allocation14 + $0x8] sm:$0xff]
        %v1634 = vld [vmem:[#allocation14 + $0x10] sm:$0xff]
        %v1635 = vld [vmem:[#allocation14 + $0x18] sm:$0xff]
        %v1636 = vld [vmem:[#allocation16] sm:$0x1]
        %v1638 = vlaneseq
        %v1639 = vshrl.u32 %v1638, 7
        %v1640 = vsub.s32 0, %v1639
        %v1641 = vrot.slane %v1636, %v1640
        %v1644 = vsel %vm650, %v1631, 0
        %1646 = vmatprep.subr.mxu0 0.0
        %1647 = vmatpush1.msra.mxu0 %v1632
        %1648 = vmatprep.subr.mxu0 0.0
        %1649 = vmatpush1.msra.mxu0 %v1633
        %1650 = vmatprep.subr.mxu0 0.0
        %1651 = vmatpush1.msra.mxu0 %v1634
        %1652 = vmatprep.subr.mxu0 0.0
        %1653 = vmatpush1.msra.mxu0 %v1635
        %1654 = vmatprep.subr.mxu0 0.0
        %1655 = vmatpush1.msra.mxu0 0.0
        %1656 = vmatprep.subr.mxu0 0.0
        %1657 = vmatpush1.msra.mxu0 0.0
        %1658 = vmatprep.subr.mxu0 0.0
        %1659 = vmatpush1.msra.mxu0 0.0
        %1660 = vmatprep.subr.mxu0 0.0
        %1661 = vmatpush1.msra.mxu0 0.0
        %1662 = vmatprep.subr.mxu0 0.0
        %1663 = vmatpush1.msra.mxu0 0.0
        %1664 = vmatprep.subr.mxu0 0.0
        %1665 = vmatpush1.msra.mxu0 0.0
        %1666 = vmatprep.subr.mxu0 0.0
        %1667 = vmatpush1.msra.mxu0 0.0
        %1668 = vmatprep.subr.mxu0 0.0
        %1669 = vmatpush1.msra.mxu0 0.0
        %1670 = vmatprep.subr.mxu0 0.0
        %1671 = vmatpush1.msra.mxu0 0.0
        %1672 = vmatprep.subr.mxu0 0.0
        %1673 = vmatpush1.msra.mxu0 0.0
        %1674 = vmatprep.subr.mxu0 0.0
        %1675 = vmatpush1.msra.mxu0 0.0
        %1676 = vmatprep.subr.mxu0 0.0
        %1677 = vmatpush1.msra.mxu0 0.0
        %1678 = vmatprep.subr.mxu0 0.0
        %1679 = vmatpush1.msra.mxu0 0.0
        %1680 = vmatprep.subr.mxu0 0.0
        %1681 = vmatpush1.msra.mxu0 0.0
        %1682 = vmatprep.subr.mxu0 0.0
        %1683 = vmatpush1.msra.mxu0 0.0
        %1684 = vmatprep.subr.mxu0 0.0
        %1685 = vmatpush1.msra.mxu0 0.0
        %1686 = vmatprep.subr.mxu0 0.0
        %1687 = vmatpush1.msra.mxu0 0.0
        %1688 = vmatprep.subr.mxu0 0.0
        %1689 = vmatpush1.msra.mxu0 0.0
        %1690 = vmatprep.subr.mxu0 0.0
        %1691 = vmatpush1.msra.mxu0 0.0
        %1692 = vmatprep.subr.mxu0 0.0
        %1693 = vmatpush1.msra.mxu0 0.0
        %1694 = vmatprep.subr.mxu0 0.0
        %1695 = vmatpush1.msra.mxu0 0.0
        %1696 = vmatprep.subr.mxu0 0.0
        %1697 = vmatpush1.msra.mxu0 0.0
        %1698 = vmatprep.subr.mxu0 0.0
        %1699 = vmatpush1.msra.mxu0 0.0
        %1700 = vmatprep.subr.mxu0 0.0
        %1701 = vmatpush1.msra.mxu0 0.0
        %1702 = vmatprep.subr.mxu0 0.0
        %1703 = vmatpush1.msra.mxu0 0.0
        %1704 = vmatprep.subr.mxu0 0.0
        %1705 = vmatpush1.msra.mxu0 0.0
        %1706 = vmatprep.subr.mxu0 0.0
        %1707 = vmatpush1.msra.mxu0 0.0
        %1708 = vmatprep.subr.mxu0 0.0
        %1709 = vmatpush1.msra.mxu0 0.0
        %1710 = vmatprep.mubr.f32.mxu0 0.0
        %1711 = vmatmul.mubr.f32.gmra.mrb[0].mxu0 %v1644
        %v1712 = vpop.f32.mrb[0].mxu0
        %v1713 = vadd.f32 %v1641, %v1712
        %v1714 = vpop.f32.mrb[0].mxu0
        %1715 = vdwg.mxu0
        %v1716 = vmax.f32 %v1713, 0.0
        %v1717 = vld [vmem:[#allocation17] sm:$0xff]
        %v1718 = vld [vmem:[#allocation17 + $0x8] sm:$0xff]
        %v1719 = vld [vmem:[#allocation17 + $0x10] sm:$0xff]
        %v1720 = vld [vmem:[#allocation17 + $0x18] sm:$0xff]
        %v1721 = vld [vmem:[#allocation17 + $0x20] sm:$0xff]
        %v1722 = vld [vmem:[#allocation17 + $0x28] sm:$0xff]
        %v1723 = vld [vmem:[#allocation17 + $0x30] sm:$0xff]
        %v1724 = vld [vmem:[#allocation17 + $0x38] sm:$0xff]
        %v1725 = vld [vmem:[#allocation19] sm:$0x1]
        %v1727 = vlaneseq
        %v1728 = vshrl.u32 %v1727, 7
        %v1729 = vsub.s32 0, %v1728
        %v1730 = vrot.slane %v1725, %v1729
        %vm1732 = vcmask 523264
        %v1734 = vsel %vm1732, %v1716, 0
        %1736 = vmatprep.subr.mxu0 0.0
        %1737 = vmatpush1.msra.mxu0 %v1717
        %1738 = vmatprep.subr.mxu0 0.0
        %1739 = vmatpush1.msra.mxu0 %v1718
        %1740 = vmatprep.subr.mxu0 0.0
        %1741 = vmatpush1.msra.mxu0 %v1719
        %1742 = vmatprep.subr.mxu0 0.0
        %1743 = vmatpush1.msra.mxu0 %v1720
        %1744 = vmatprep.subr.mxu0 0.0
        %1745 = vmatpush1.msra.mxu0 %v1721
        %1746 = vmatprep.subr.mxu0 0.0
        %1747 = vmatpush1.msra.mxu0 %v1722
        %1748 = vmatprep.subr.mxu0 0.0
        %1749 = vmatpush1.msra.mxu0 %v1723
        %1750 = vmatprep.subr.mxu0 0.0
        %1751 = vmatpush1.msra.mxu0 %v1724
        %1752 = vmatprep.subr.mxu0 0.0
        %1753 = vmatpush1.msra.mxu0 0.0
        %1754 = vmatprep.subr.mxu0 0.0
        %1755 = vmatpush1.msra.mxu0 0.0
        %1756 = vmatprep.subr.mxu0 0.0
        %1757 = vmatpush1.msra.mxu0 0.0
        %1758 = vmatprep.subr.mxu0 0.0
        %1759 = vmatpush1.msra.mxu0 0.0
        %1760 = vmatprep.subr.mxu0 0.0
        %1761 = vmatpush1.msra.mxu0 0.0
        %1762 = vmatprep.subr.mxu0 0.0
        %1763 = vmatpush1.msra.mxu0 0.0
        %1764 = vmatprep.subr.mxu0 0.0
        %1765 = vmatpush1.msra.mxu0 0.0
        %1766 = vmatprep.subr.mxu0 0.0
        %1767 = vmatpush1.msra.mxu0 0.0
        %1768 = vmatprep.subr.mxu0 0.0
        %1769 = vmatpush1.msra.mxu0 0.0
        %1770 = vmatprep.subr.mxu0 0.0
        %1771 = vmatpush1.msra.mxu0 0.0
        %1772 = vmatprep.subr.mxu0 0.0
        %1773 = vmatpush1.msra.mxu0 0.0
        %1774 = vmatprep.subr.mxu0 0.0
        %1775 = vmatpush1.msra.mxu0 0.0
        %1776 = vmatprep.subr.mxu0 0.0
        %1777 = vmatpush1.msra.mxu0 0.0
        %1778 = vmatprep.subr.mxu0 0.0
        %1779 = vmatpush1.msra.mxu0 0.0
        %1780 = vmatprep.subr.mxu0 0.0
        %1781 = vmatpush1.msra.mxu0 0.0
        %1782 = vmatprep.subr.mxu0 0.0
        %1783 = vmatpush1.msra.mxu0 0.0
        %1784 = vmatprep.subr.mxu0 0.0
        %1785 = vmatpush1.msra.mxu0 0.0
        %1786 = vmatprep.subr.mxu0 0.0
        %1787 = vmatpush1.msra.mxu0 0.0
        %1788 = vmatprep.subr.mxu0 0.0
        %1789 = vmatpush1.msra.mxu0 0.0
        %1790 = vmatprep.subr.mxu0 0.0
        %1791 = vmatpush1.msra.mxu0 0.0
        %1792 = vmatprep.subr.mxu0 0.0
        %1793 = vmatpush1.msra.mxu0 0.0
        %1794 = vmatprep.subr.mxu0 0.0
        %1795 = vmatpush1.msra.mxu0 0.0
        %1796 = vmatprep.subr.mxu0 0.0
        %1797 = vmatpush1.msra.mxu0 0.0
        %1798 = vmatprep.subr.mxu0 0.0
        %1799 = vmatpush1.msra.mxu0 0.0
        %1800 = vmatprep.mubr.f32.mxu0 0.0
        %1801 = vmatmul.mubr.f32.gmra.mrb[0].mxu0 %v1734
        %v1802 = vpop.f32.mrb[0].mxu0
        %v1803 = vadd.f32 %v1730, %v1802
        %v1804 = vpop.f32.mrb[0].mxu0
        %1805 = vdwg.mxu0
        %v1806 = vadd.f32 %v1803, %v1631
        %v1807 = vld [vmem:[#allocation20] sm:$0x1]
        %v1808 = vld [vmem:[#allocation22] sm:$0x1]
        %v1809 = vsel %vm650, %v1806, 0.0
        %1810 = vadd.xlane.f32.xlu0 %v1809
        %v1811 = vpop.xlane.xlu0 %1810
        %v1812 = vmul.f32 %v1811, 0.03125
        %v1813 = vmul.f32 %v1806, %v1806
        %v1814 = vsel %vm650, %v1813, 0.0
        %1815 = vadd.xlane.f32.xlu0 %v1814
        %v1816 = vpop.xlane.xlu0 %1815
        %v1817 = vmul.f32 %v1816, 0.03125
        %v1818 = vmul.f32 %v1812, %v1812
        %v1819 = vsub.f32 %v1817, %v1818
        %v1820 = vmul.f32 %v1819, 1.032258
        %v1821 = vmax.f32 %v1820, 0.0
        %v1822 = vrsqrt.pop %v1821
        %v1823 = vmul.f32 %v1821, %v1822
        %vm1824 = vcmp.eq.f32.partialorder %v1821, inf
        %v1825 = vsel %vm1824, %v1821, %v1823
        %vm1826 = vcmp.eq.f32.partialorder %v1821, 0.0
        %v1827 = vand.u32 %v1821, 2147483648
        %v1828 = vsel %vm1826, %v1827, %v1825
        %v1829 = vsub.f32 %v1806, %v1812
        %v1830 = vadd.f32 %v1828, 0.001
        %v1831 = vrcp.pop %v1830
        %v1832 = vmul.f32 %v1829, %v1831
        %v1834 = vlaneseq
        %v1835 = vshrl.u32 %v1834, 7
        %v1836 = vsub.s32 0, %v1835
        %v1837 = vrot.slane %v1807, %v1836
        %v1839 = vmul.f32 %v1832, %v1837
        %v1841 = vlaneseq
        %v1842 = vshrl.u32 %v1841, 7
        %v1843 = vsub.s32 0, %v1842
        %v1844 = vrot.slane %v1808, %v1843
        %v1846 = vadd.f32 %v1839, %v1844
        %1847 = vst.msk [vmem:[%s642] sm:$0xff] %vm650, %v1846
        %s1848 = sand.u32 %s329, 1
        %s1849 = scalar_lea.sflag [#allocation4], %s1848
        %s1850 = sand.u32 %s329, 1
        %s1851 = smul.addr %s1850, 8
        %s1852 = scalar_lea.vmem [#allocation23], %s1851
        // Predicated region
        $region125: #{tpu_custom_call.1} parent=71 // pred_check
          %p1853 = pneg %p339
        $region126: #{tpu_custom_call.1} parent=71 // pred_check_branch
          %1855 = sbr.rel (%p1853) target = $region128
        $region127: #{tpu_custom_call.1} parent=71 // pred_region
          %s1857 = ssub.s32 128, 128
          %1858 = vsyncadd %s1849, %s1857
          %s1859 = smul.addr %s38, 128
          %s1860 = scalar_lea.hbm %s13, %s1859
          %s1862 = sshll.u32 %s1852, 4
          %s1863 = int_to_ptr.vmem [resolvable:$true] %s1862
          %1865 = dma.vmem_to_hbm [thread:$0]  %s1863, 128, %s1860, %s1849
        $region128: #{tpu_custom_call.1} parent=71 // pred_fallthru
          _
      $region72: #{tpu_custom_call.1} parent=5 // pred_fallthru
        _
      %p1866 = scmp.le.s32.totalorder 2, %s33
      // Predicated region
      $region129: #{tpu_custom_call.1} parent=5 // pred_check
        %p1867 = pneg %p1866
      $region130: #{tpu_custom_call.1} parent=5 // pred_check_branch
        %1869 = sbr.rel (%p1867) target = $region132
      $region131: #{tpu_custom_call.1} parent=5 // pred_region
        %s1870 = ssub.s32 %s33, 2
        // Predicated region
        $region133: #{tpu_custom_call.1} parent=131 // pred_check
          %p1871 = pneg %p345
        $region134: #{tpu_custom_call.1} parent=131 // pred_check_branch
          %1873 = sbr.rel (%p1871) target = $region136
        $region135: #{tpu_custom_call.1} parent=131 // pred_region
          %s1874 = sand.u32 %s330, 1
          %s1875 = scalar_lea.sflag [#allocation4], %s1874
          %s1876 = sand.u32 %s330, 1
          %s1877 = smul.addr %s1876, 8
          %s1878 = scalar_lea.vmem [#allocation23], %s1877
          %1879 = dma.done %s1875, 128
        $region136: #{tpu_custom_call.1} parent=131 // pred_fallthru
          _
      $region132: #{tpu_custom_call.1} parent=5 // pred_fallthru
        _
    $region6: #{tpu_custom_call.1} parent=1 // loop_footer
      %s37 = sadd.s32 1, %s33
    $region7: #{tpu_custom_call.1} parent=1 // loop_footer_branch
      %32 = sbr.rel target = $region3
    $region8: #{tpu_custom_call.1} parent=1 // loop_exit
      _
    %1880 = vsyncpa [#allocation3], 1
    %s1881 = scalar_lea.sflag [#allocation3], 1
    %1882 = vsyncpa %s1881, 1
    %1883 = vsyncpa [#allocation6], 1
    %s1884 = scalar_lea.sflag [#allocation6], 1
    %1885 = vsyncpa %s1884, 1
    %1886 = vsyncpa [#allocation9], 1
    %1887 = vsyncpa [#allocation12], 1
    %1888 = vsyncpa [#allocation15], 1
    %1889 = vsyncpa [#allocation18], 1
    %1890 = vsyncpa [#allocation21], 1
    %1891 = vsyncpa [#allocation4], 1
    %s1892 = scalar_lea.sflag [#allocation4], 1
    %1893 = vsyncpa %s1892, 1

</llo_original>
